<compile_context>
chip_gen: v5e
topology: v5e:2x2
jax: 0.10.0
libtpu: 0.0.40
codegen_flags: <defaults>
</compile_context>

<pallas_src>
import functools

import jax
import jax.numpy as jnp
from jax import lax
from jax.experimental import pallas as pl
from jax.experimental.pallas import tpu as pltpu


def lstm_reg_kernel(x_ref,
                    wih0_ref, whh0_ref, b0_ref,
                    wih1_ref, whh1_ref, b1_ref,
                    wreg_ref, breg_ref,
                    out_ref,
                    xg0_sc, h1_all_sc,
                    *, seq_len, hidden):
    S = seq_len
    H = hidden
    Bp = x_ref.shape[1]
    In = x_ref.shape[2]
    O = out_ref.shape[2]
    G = 4 * H

    # ---- Hoisted layer-0 input projection: one batched matmul for all t ----
    # (S, Bp, In) -> (S*Bp, In) is a pure leading-dim collapse (sublane-major),
    # so no relayout is required.
    x_flat = x_ref[...].reshape(S * Bp, In)                      # (S*Bp, In)
    xg0 = (jnp.dot(x_flat, wih0_ref[...],
                   preferred_element_type=jnp.float32)
           + b0_ref[...])                                        # (S*Bp, 4H)
    xg0_sc[...] = xg0.reshape(S, Bp, G)

    # ---- Weights / bias loaded & broadcast ONCE, outside the recurrence ----
    whh0 = whh0_ref[...]
    wih1 = wih1_ref[...]
    whh1 = whh1_ref[...]
    b1_full = jnp.broadcast_to(b1_ref[...], (Bp, G))

    def step(t, carry):
        h0, c0, h1, c1 = carry

        # Layer-1 recurrent term only depends on the previous step's h1, so it
        # is issued first and can overlap the whole layer-0 chain below.
        r1 = jnp.dot(h1, whh1, preferred_element_type=jnp.float32)

        # Layer 0: only the recurrent matmul remains on the serial path.
        g0 = xg0_sc[t] + jnp.dot(h0, whh0, preferred_element_type=jnp.float32)
        sg0 = jax.nn.sigmoid(g0)          # full-width (Bp, 4H): 1 EUP vreg op
        tg0 = jnp.tanh(g0)                # full-width (Bp, 4H): 1 EUP vreg op
        c0n = sg0[:, H:2 * H] * c0 + sg0[:, 0:H] * tg0[:, 2 * H:3 * H]
        h0n = sg0[:, 3 * H:4 * H] * jnp.tanh(c0n)

        # Layer 1 (consumes layer-0 output of the same timestep).
        g1 = (jnp.dot(h0n, wih1, preferred_element_type=jnp.float32)
              + r1 + b1_full)
        sg1 = jax.nn.sigmoid(g1)
        tg1 = jnp.tanh(g1)
        c1n = sg1[:, H:2 * H] * c1 + sg1[:, 0:H] * tg1[:, 2 * H:3 * H]
        h1n = sg1[:, 3 * H:4 * H] * jnp.tanh(c1n)

        h1_all_sc[t] = h1n                # stash for the hoisted head matmul
        return (h0n, c0n, h1n, c1n)

    z = jnp.zeros((Bp, H), jnp.float32)
    lax.fori_loop(0, S, step, (z, z, z, z), unroll=True)

    # ---- Hoisted regression head: one (S*Bp, H) @ (H, O) matmul + one store ----
    h1_flat = h1_all_sc[...].reshape(S * Bp, H)
    y = (jnp.dot(h1_flat, wreg_ref[...], preferred_element_type=jnp.float32)
         + breg_ref[...])                                        # (S*Bp, O)
    out_ref[...] = y.reshape(S, Bp, O)


def lstm_reg_forward(x, params):
    """x: (S, B, input_size) float32. Returns (S, B, output_size) float32."""
    S, B, In = x.shape
    H = params["whh0_t"].shape[0]
    O = params["wreg_t"].shape[1]
    G = 4 * H

    # Pad batch to the f32 sublane tile (8) so every vector op is unmasked.
    Bp = max(8, ((B + 7) // 8) * 8)
    if Bp != B:
        x = jnp.pad(x, ((0, 0), (0, Bp - B), (0, 0)))

    kernel = functools.partial(lstm_reg_kernel, seq_len=S, hidden=H)

    out = pl.pallas_call(
        kernel,
        out_shape=jax.ShapeDtypeStruct((S, Bp, O), jnp.float32),
        in_specs=[pl.BlockSpec(memory_space=pltpu.MemorySpace.VMEM)] * 9,
        out_specs=pl.BlockSpec(memory_space=pltpu.MemorySpace.VMEM),
        scratch_shapes=[
            pltpu.VMEM((S, Bp, G), jnp.float32),   # hoisted x @ W_ih0^T + b0
            pltpu.VMEM((S, Bp, H), jnp.float32),   # per-step layer-1 hidden
        ],
    )(x,
      params["wih0_t"], params["whh0_t"], params["b0"],
      params["wih1_t"], params["whh1_t"], params["b1"],
      params["wreg_t"], params["breg"])

    return out[:, :B, :]


def lstm_reg_reference(x, params):
    """Pure-JAX reference (same math) for correctness checking."""
    S, B, In = x.shape
    H = params["whh0_t"].shape[0]

    def cell(x_in, h, c, wih_t, whh_t, b):
        gates = x_in @ wih_t + h @ whh_t + b
        i = jax.nn.sigmoid(gates[:, 0 * H:1 * H])
        f = jax.nn.sigmoid(gates[:, 1 * H:2 * H])
        g = jnp.tanh(gates[:, 2 * H:3 * H])
        o = jax.nn.sigmoid(gates[:, 3 * H:4 * H])
        c_new = f * c + i * g
        return o * jnp.tanh(c_new), c_new

    def step(carry, x_t):
        h0, c0, h1, c1 = carry
        h0, c0 = cell(x_t, h0, c0, params["wih0_t"], params["whh0_t"], params["b0"])
        h1, c1 = cell(h0, h1, c1, params["wih1_t"], params["whh1_t"], params["b1"])
        y = h1 @ params["wreg_t"] + params["breg"]
        return (h0, c0, h1, c1), y

    z = jnp.zeros((B, H), jnp.float32)
    _, ys = jax.lax.scan(step, (z, z, z, z), x)
    return ys


def init_params(key, input_size, hidden_size, output_size):
    """Deterministic init (PyTorch-style U(-1/sqrt(H), 1/sqrt(H)))."""
    H, In, O = hidden_size, input_size, output_size
    k = 1.0 / jnp.sqrt(jnp.float32(H))
    keys = jax.random.split(key, 11)
    u = lambda kk, shape: jax.random.uniform(kk, shape, jnp.float32, -k, k)
    # Layer 0: W_ih (4H, In), W_hh (4H, H), biases (4H,)
    wih0 = u(keys[0], (4 * H, In))
    whh0 = u(keys[1], (4 * H, H))
    bih0 = u(keys[2], (4 * H,))
    bhh0 = u(keys[3], (4 * H,))
    # Layer 1: W_ih (4H, H)
    wih1 = u(keys[4], (4 * H, H))
    whh1 = u(keys[5], (4 * H, H))
    bih1 = u(keys[6], (4 * H,))
    bhh1 = u(keys[7], (4 * H,))
    # Regression head: (O, H), (O,)
    wreg = u(keys[8], (O, H))
    breg = u(keys[9], (O,))
    return {
        "wih0_t": wih0.T, "whh0_t": whh0.T, "b0": (bih0 + bhh0)[None, :],
        "wih1_t": wih1.T, "whh1_t": whh1.T, "b1": (bih1 + bhh1)[None, :],
        "wreg_t": wreg.T, "breg": breg[None, :],
    }


if __name__ == "__main__":
    SEQ, BATCH, INPUT, HIDDEN, OUTPUT = 8, 2, 4, 32, 1

    key = jax.random.PRNGKey(0)
    kx, kp = jax.random.split(key)
    x = jax.random.normal(kx, (SEQ, BATCH, INPUT), jnp.float32)
    params = init_params(kp, INPUT, HIDDEN, OUTPUT)

    out = lstm_reg_forward(x, params)
    out = jax.block_until_ready(out)
    assert out.shape == (SEQ, BATCH, OUTPUT), out.shape

    ref = jax.block_until_ready(lstm_reg_reference(x, params))
    assert jnp.allclose(out, ref, rtol=1e-5, atol=1e-5), \
        f"max abs err = {jnp.max(jnp.abs(out - ref))}"

    print("KERNEL_OK")
</pallas_src>

<mosaic_0001>
module attributes {stable_mosaic.version = 11 : i64} {
  func.func @lstm_reg_kernel(%arg0: memref<8x8x4xf32, #tpu.memory_space<vmem>>, %arg1: memref<4x128xf32, #tpu.memory_space<vmem>>, %arg2: memref<32x128xf32, #tpu.memory_space<vmem>>, %arg3: memref<1x128xf32, #tpu.memory_space<vmem>>, %arg4: memref<32x128xf32, #tpu.memory_space<vmem>>, %arg5: memref<32x128xf32, #tpu.memory_space<vmem>>, %arg6: memref<1x128xf32, #tpu.memory_space<vmem>>, %arg7: memref<32x1xf32, #tpu.memory_space<vmem>>, %arg8: memref<1x1xf32, #tpu.memory_space<vmem>>, %arg9: memref<8x8x1xf32, #tpu.memory_space<vmem>>, %arg10: memref<8x8x128xf32, #tpu.memory_space<vmem>>, %arg11: memref<8x8x32xf32, #tpu.memory_space<vmem>>) attributes {dimension_semantics = [], scalar_prefetch = 0 : i64, scratch_operands = 2 : i64, tpu.core_type = #tpu.core_type<tc>} {
    %c0 = arith.constant 0 : index
    %c0_0 = arith.constant 0 : index
    %c0_1 = arith.constant 0 : index
    %0 = vector.load %arg0[%c0, %c0_0, %c0_1] : memref<8x8x4xf32, #tpu.memory_space<vmem>>, vector<8x8x4xf32>
    %1 = vector.shape_cast %0 : vector<8x8x4xf32> to vector<64x4xf32>
    %c0_2 = arith.constant 0 : index
    %c0_3 = arith.constant 0 : index
    %2 = vector.load %arg1[%c0_2, %c0_3] : memref<4x128xf32, #tpu.memory_space<vmem>>, vector<4x128xf32>
    %cst = arith.constant dense<0.000000e+00> : vector<64x128xf32>
    %3 = tpu.matmul %1, %2, %cst {dimension_numbers = #tpu.dot_dimension_numbers<[1], [0], [0], [1], [0, 0, 1, 1], [], []>} : vector<64x4xf32>, vector<4x128xf32>, vector<64x128xf32> -> vector<64x128xf32>
    %c0_4 = arith.constant 0 : index
    %c0_5 = arith.constant 0 : index
    %4 = vector.load %arg3[%c0_4, %c0_5] : memref<1x128xf32, #tpu.memory_space<vmem>>, vector<1x128xf32>
    %5 = vector.broadcast %4 : vector<1x128xf32> to vector<64x128xf32>
    %6 = arith.addf %3, %5 : vector<64x128xf32>
    %7 = vector.shape_cast %6 : vector<64x128xf32> to vector<8x8x128xf32>
    %c0_6 = arith.constant 0 : index
    %c0_7 = arith.constant 0 : index
    %c0_8 = arith.constant 0 : index
    %8 = vector.load %arg10[%c0_6, %c0_7, %c0_8] : memref<8x8x128xf32, #tpu.memory_space<vmem>>, vector<8x8x128xf32>
    tpu.vector_store %arg10[%c0_6, %c0_7, %c0_8], %7 {strides = array<i32>} : memref<8x8x128xf32, #tpu.memory_space<vmem>>, vector<8x8x128xf32>,
    %c0_9 = arith.constant 0 : index
    %c0_10 = arith.constant 0 : index
    %9 = vector.load %arg2[%c0_9, %c0_10] : memref<32x128xf32, #tpu.memory_space<vmem>>, vector<32x128xf32>
    %c0_11 = arith.constant 0 : index
    %c0_12 = arith.constant 0 : index
    %10 = vector.load %arg4[%c0_11, %c0_12] : memref<32x128xf32, #tpu.memory_space<vmem>>, vector<32x128xf32>
    %c0_13 = arith.constant 0 : index
    %c0_14 = arith.constant 0 : index
    %11 = vector.load %arg5[%c0_13, %c0_14] : memref<32x128xf32, #tpu.memory_space<vmem>>, vector<32x128xf32>
    %c0_15 = arith.constant 0 : index
    %c0_16 = arith.constant 0 : index
    %12 = vector.load %arg6[%c0_15, %c0_16] : memref<1x128xf32, #tpu.memory_space<vmem>>, vector<1x128xf32>
    %13 = vector.shape_cast %12 : vector<1x128xf32> to vector<1x128xf32>
    %14 = vector.broadcast %13 : vector<1x128xf32> to vector<8x128xf32>
    %cst_17 = arith.constant 0.000000e+00 : f32
    %15 = vector.broadcast %cst_17 : f32 to vector<8x32xf32>
    %c0_i32 = arith.constant 0 : i32
    %cst_18 = arith.constant dense<0.000000e+00> : vector<8x128xf32>
    %16 = tpu.matmul %15, %11, %cst_18 {dimension_numbers = #tpu.dot_dimension_numbers<[1], [0], [0], [1], [0, 0, 1, 1], [], []>} : vector<8x32xf32>, vector<32x128xf32>, vector<8x128xf32> -> vector<8x128xf32>
    %17 = arith.index_cast %c0_i32 : i32 to index
    %c0_19 = arith.constant 0 : index
    %c0_20 = arith.constant 0 : index
    %18 = vector.load %arg10[%17, %c0_19, %c0_20] : memref<8x8x128xf32, #tpu.memory_space<vmem>>, vector<1x8x128xf32>
    %19 = vector.shape_cast %18 : vector<1x8x128xf32> to vector<8x128xf32>
    %cst_21 = arith.constant dense<0.000000e+00> : vector<8x128xf32>
    %20 = tpu.matmul %15, %9, %cst_21 {dimension_numbers = #tpu.dot_dimension_numbers<[1], [0], [0], [1], [0, 0, 1, 1], [], []>} : vector<8x32xf32>, vector<32x128xf32>, vector<8x128xf32> -> vector<8x128xf32>
    %21 = arith.addf %19, %20 : vector<8x128xf32>
    %22 = arith.negf %21 : vector<8x128xf32>
    %23 = math.exp %22 : vector<8x128xf32>
    %cst_22 = arith.constant 1.000000e+00 : f32
    %24 = vector.broadcast %cst_22 : f32 to vector<8x128xf32>
    %25 = arith.addf %24, %23 : vector<8x128xf32>
    %26 = arith.divf %24, %25 : vector<8x128xf32>
    %27 = math.tanh %21 : vector<8x128xf32>
    %28 = vector.extract_strided_slice %26 {offsets = [0, 32], sizes = [8, 32], strides = [1, 1]} : vector<8x128xf32> to vector<8x32xf32>
    %29 = arith.mulf %28, %15 : vector<8x32xf32>
    %30 = vector.extract_strided_slice %26 {offsets = [0, 0], sizes = [8, 32], strides = [1, 1]} : vector<8x128xf32> to vector<8x32xf32>
    %31 = vector.extract_strided_slice %27 {offsets = [0, 64], sizes = [8, 32], strides = [1, 1]} : vector<8x128xf32> to vector<8x32xf32>
    %32 = arith.mulf %30, %31 : vector<8x32xf32>
    %33 = arith.addf %29, %32 : vector<8x32xf32>
    %34 = vector.extract_strided_slice %26 {offsets = [0, 96], sizes = [8, 32], strides = [1, 1]} : vector<8x128xf32> to vector<8x32xf32>
    %35 = math.tanh %33 : vector<8x32xf32>
    %36 = arith.mulf %34, %35 : vector<8x32xf32>
    %cst_23 = arith.constant dense<0.000000e+00> : vector<8x128xf32>
    %37 = tpu.matmul %36, %10, %cst_23 {dimension_numbers = #tpu.dot_dimension_numbers<[1], [0], [0], [1], [0, 0, 1, 1], [], []>} : vector<8x32xf32>, vector<32x128xf32>, vector<8x128xf32> -> vector<8x128xf32>
    %38 = arith.addf %37, %16 : vector<8x128xf32>
    %39 = arith.addf %38, %14 : vector<8x128xf32>
    %40 = arith.negf %39 : vector<8x128xf32>
    %41 = math.exp %40 : vector<8x128xf32>
    %cst_24 = arith.constant 1.000000e+00 : f32
    %42 = vector.broadcast %cst_24 : f32 to vector<8x128xf32>
    %43 = arith.addf %42, %41 : vector<8x128xf32>
    %44 = arith.divf %42, %43 : vector<8x128xf32>
    %45 = math.tanh %39 : vector<8x128xf32>
    %46 = vector.extract_strided_slice %44 {offsets = [0, 32], sizes = [8, 32], strides = [1, 1]} : vector<8x128xf32> to vector<8x32xf32>
    %47 = arith.mulf %46, %15 : vector<8x32xf32>
    %48 = vector.extract_strided_slice %44 {offsets = [0, 0], sizes = [8, 32], strides = [1, 1]} : vector<8x128xf32> to vector<8x32xf32>
    %49 = vector.extract_strided_slice %45 {offsets = [0, 64], sizes = [8, 32], strides = [1, 1]} : vector<8x128xf32> to vector<8x32xf32>
    %50 = arith.mulf %48, %49 : vector<8x32xf32>
    %51 = arith.addf %47, %50 : vector<8x32xf32>
    %52 = vector.extract_strided_slice %44 {offsets = [0, 96], sizes = [8, 32], strides = [1, 1]} : vector<8x128xf32> to vector<8x32xf32>
    %53 = math.tanh %51 : vector<8x32xf32>
    %54 = arith.mulf %52, %53 : vector<8x32xf32>
    %55 = arith.index_cast %c0_i32 : i32 to index
    %c0_25 = arith.constant 0 : index
    %c0_26 = arith.constant 0 : index
    %56 = vector.load %arg11[%55, %c0_25, %c0_26] : memref<8x8x32xf32, #tpu.memory_space<vmem>>, vector<1x8x32xf32>
    %57 = vector.shape_cast %56 : vector<1x8x32xf32> to vector<8x32xf32>
    %58 = vector.shape_cast %54 : vector<8x32xf32> to vector<1x8x32xf32>
    tpu.vector_store %arg11[%55, %c0_25, %c0_26], %58 {strides = array<i32>} : memref<8x8x32xf32, #tpu.memory_space<vmem>>, vector<1x8x32xf32>,
    %c1_i32 = arith.constant 1 : i32
    %cst_27 = arith.constant dense<0.000000e+00> : vector<8x128xf32>
    %59 = tpu.matmul %54, %11, %cst_27 {dimension_numbers = #tpu.dot_dimension_numbers<[1], [0], [0], [1], [0, 0, 1, 1], [], []>} : vector<8x32xf32>, vector<32x128xf32>, vector<8x128xf32> -> vector<8x128xf32>
    %60 = arith.index_cast %c1_i32 : i32 to index
    %c0_28 = arith.constant 0 : index
    %c0_29 = arith.constant 0 : index
    %61 = vector.load %arg10[%60, %c0_28, %c0_29] : memref<8x8x128xf32, #tpu.memory_space<vmem>>, vector<1x8x128xf32>
    %62 = vector.shape_cast %61 : vector<1x8x128xf32> to vector<8x128xf32>
    %cst_30 = arith.constant dense<0.000000e+00> : vector<8x128xf32>
    %63 = tpu.matmul %36, %9, %cst_30 {dimension_numbers = #tpu.dot_dimension_numbers<[1], [0], [0], [1], [0, 0, 1, 1], [], []>} : vector<8x32xf32>, vector<32x128xf32>, vector<8x128xf32> -> vector<8x128xf32>
    %64 = arith.addf %62, %63 : vector<8x128xf32>
    %65 = arith.negf %64 : vector<8x128xf32>
    %66 = math.exp %65 : vector<8x128xf32>
    %cst_31 = arith.constant 1.000000e+00 : f32
    %67 = vector.broadcast %cst_31 : f32 to vector<8x128xf32>
    %68 = arith.addf %67, %66 : vector<8x128xf32>
    %69 = arith.divf %67, %68 : vector<8x128xf32>
    %70 = math.tanh %64 : vector<8x128xf32>
    %71 = vector.extract_strided_slice %69 {offsets = [0, 32], sizes = [8, 32], strides = [1, 1]} : vector<8x128xf32> to vector<8x32xf32>
    %72 = arith.mulf %71, %33 : vector<8x32xf32>
    %73 = vector.extract_strided_slice %69 {offsets = [0, 0], sizes = [8, 32], strides = [1, 1]} : vector<8x128xf32> to vector<8x32xf32>
    %74 = vector.extract_strided_slice %70 {offsets = [0, 64], sizes = [8, 32], strides = [1, 1]} : vector<8x128xf32> to vector<8x32xf32>
    %75 = arith.mulf %73, %74 : vector<8x32xf32>
    %76 = arith.addf %72, %75 : vector<8x32xf32>
    %77 = vector.extract_strided_slice %69 {offsets = [0, 96], sizes = [8, 32], strides = [1, 1]} : vector<8x128xf32> to vector<8x32xf32>
    %78 = math.tanh %76 : vector<8x32xf32>
    %79 = arith.mulf %77, %78 : vector<8x32xf32>
    %cst_32 = arith.constant dense<0.000000e+00> : vector<8x128xf32>
    %80 = tpu.matmul %79, %10, %cst_32 {dimension_numbers = #tpu.dot_dimension_numbers<[1], [0], [0], [1], [0, 0, 1, 1], [], []>} : vector<8x32xf32>, vector<32x128xf32>, vector<8x128xf32> -> vector<8x128xf32>
    %81 = arith.addf %80, %59 : vector<8x128xf32>
    %82 = arith.addf %81, %14 : vector<8x128xf32>
    %83 = arith.negf %82 : vector<8x128xf32>
    %84 = math.exp %83 : vector<8x128xf32>
    %cst_33 = arith.constant 1.000000e+00 : f32
    %85 = vector.broadcast %cst_33 : f32 to vector<8x128xf32>
    %86 = arith.addf %85, %84 : vector<8x128xf32>
    %87 = arith.divf %85, %86 : vector<8x128xf32>
    %88 = math.tanh %82 : vector<8x128xf32>
    %89 = vector.extract_strided_slice %87 {offsets = [0, 32], sizes = [8, 32], strides = [1, 1]} : vector<8x128xf32> to vector<8x32xf32>
    %90 = arith.mulf %89, %51 : vector<8x32xf32>
    %91 = vector.extract_strided_slice %87 {offsets = [0, 0], sizes = [8, 32], strides = [1, 1]} : vector<8x128xf32> to vector<8x32xf32>
    %92 = vector.extract_strided_slice %88 {offsets = [0, 64], sizes = [8, 32], strides = [1, 1]} : vector<8x128xf32> to vector<8x32xf32>
    %93 = arith.mulf %91, %92 : vector<8x32xf32>
    %94 = arith.addf %90, %93 : vector<8x32xf32>
    %95 = vector.extract_strided_slice %87 {offsets = [0, 96], sizes = [8, 32], strides = [1, 1]} : vector<8x128xf32> to vector<8x32xf32>
    %96 = math.tanh %94 : vector<8x32xf32>
    %97 = arith.mulf %95, %96 : vector<8x32xf32>
    %98 = arith.index_cast %c1_i32 : i32 to index
    %c0_34 = arith.constant 0 : index
    %c0_35 = arith.constant 0 : index
    %99 = vector.load %arg11[%98, %c0_34, %c0_35] : memref<8x8x32xf32, #tpu.memory_space<vmem>>, vector<1x8x32xf32>
    %100 = vector.shape_cast %99 : vector<1x8x32xf32> to vector<8x32xf32>
    %101 = vector.shape_cast %97 : vector<8x32xf32> to vector<1x8x32xf32>
    tpu.vector_store %arg11[%98, %c0_34, %c0_35], %101 {strides = array<i32>} : memref<8x8x32xf32, #tpu.memory_space<vmem>>, vector<1x8x32xf32>,
    %c2_i32 = arith.constant 2 : i32
    %cst_36 = arith.constant dense<0.000000e+00> : vector<8x128xf32>
    %102 = tpu.matmul %97, %11, %cst_36 {dimension_numbers = #tpu.dot_dimension_numbers<[1], [0], [0], [1], [0, 0, 1, 1], [], []>} : vector<8x32xf32>, vector<32x128xf32>, vector<8x128xf32> -> vector<8x128xf32>
    %103 = arith.index_cast %c2_i32 : i32 to index
    %c0_37 = arith.constant 0 : index
    %c0_38 = arith.constant 0 : index
    %104 = vector.load %arg10[%103, %c0_37, %c0_38] : memref<8x8x128xf32, #tpu.memory_space<vmem>>, vector<1x8x128xf32>
    %105 = vector.shape_cast %104 : vector<1x8x128xf32> to vector<8x128xf32>
    %cst_39 = arith.constant dense<0.000000e+00> : vector<8x128xf32>
    %106 = tpu.matmul %79, %9, %cst_39 {dimension_numbers = #tpu.dot_dimension_numbers<[1], [0], [0], [1], [0, 0, 1, 1], [], []>} : vector<8x32xf32>, vector<32x128xf32>, vector<8x128xf32> -> vector<8x128xf32>
    %107 = arith.addf %105, %106 : vector<8x128xf32>
    %108 = arith.negf %107 : vector<8x128xf32>
    %109 = math.exp %108 : vector<8x128xf32>
    %cst_40 = arith.constant 1.000000e+00 : f32
    %110 = vector.broadcast %cst_40 : f32 to vector<8x128xf32>
    %111 = arith.addf %110, %109 : vector<8x128xf32>
    %112 = arith.divf %110, %111 : vector<8x128xf32>
    %113 = math.tanh %107 : vector<8x128xf32>
    %114 = vector.extract_strided_slice %112 {offsets = [0, 32], sizes = [8, 32], strides = [1, 1]} : vector<8x128xf32> to vector<8x32xf32>
    %115 = arith.mulf %114, %76 : vector<8x32xf32>
    %116 = vector.extract_strided_slice %112 {offsets = [0, 0], sizes = [8, 32], strides = [1, 1]} : vector<8x128xf32> to vector<8x32xf32>
    %117 = vector.extract_strided_slice %113 {offsets = [0, 64], sizes = [8, 32], strides = [1, 1]} : vector<8x128xf32> to vector<8x32xf32>
    %118 = arith.mulf %116, %117 : vector<8x32xf32>
    %119 = arith.addf %115, %118 : vector<8x32xf32>
    %120 = vector.extract_strided_slice %112 {offsets = [0, 96], sizes = [8, 32], strides = [1, 1]} : vector<8x128xf32> to vector<8x32xf32>
    %121 = math.tanh %119 : vector<8x32xf32>
    %122 = arith.mulf %120, %121 : vector<8x32xf32>
    %cst_41 = arith.constant dense<0.000000e+00> : vector<8x128xf32>
    %123 = tpu.matmul %122, %10, %cst_41 {dimension_numbers = #tpu.dot_dimension_numbers<[1], [0], [0], [1], [0, 0, 1, 1], [], []>} : vector<8x32xf32>, vector<32x128xf32>, vector<8x128xf32> -> vector<8x128xf32>
    %124 = arith.addf %123, %102 : vector<8x128xf32>
    %125 = arith.addf %124, %14 : vector<8x128xf32>
    %126 = arith.negf %125 : vector<8x128xf32>
    %127 = math.exp %126 : vector<8x128xf32>
    %cst_42 = arith.constant 1.000000e+00 : f32
    %128 = vector.broadcast %cst_42 : f32 to vector<8x128xf32>
    %129 = arith.addf %128, %127 : vector<8x128xf32>
    %130 = arith.divf %128, %129 : vector<8x128xf32>
    %131 = math.tanh %125 : vector<8x128xf32>
    %132 = vector.extract_strided_slice %130 {offsets = [0, 32], sizes = [8, 32], strides = [1, 1]} : vector<8x128xf32> to vector<8x32xf32>
    %133 = arith.mulf %132, %94 : vector<8x32xf32>
    %134 = vector.extract_strided_slice %130 {offsets = [0, 0], sizes = [8, 32], strides = [1, 1]} : vector<8x128xf32> to vector<8x32xf32>
    %135 = vector.extract_strided_slice %131 {offsets = [0, 64], sizes = [8, 32], strides = [1, 1]} : vector<8x128xf32> to vector<8x32xf32>
    %136 = arith.mulf %134, %135 : vector<8x32xf32>
    %137 = arith.addf %133, %136 : vector<8x32xf32>
    %138 = vector.extract_strided_slice %130 {offsets = [0, 96], sizes = [8, 32], strides = [1, 1]} : vector<8x128xf32> to vector<8x32xf32>
    %139 = math.tanh %137 : vector<8x32xf32>
    %140 = arith.mulf %138, %139 : vector<8x32xf32>
    %141 = arith.index_cast %c2_i32 : i32 to index
    %c0_43 = arith.constant 0 : index
    %c0_44 = arith.constant 0 : index
    %142 = vector.load %arg11[%141, %c0_43, %c0_44] : memref<8x8x32xf32, #tpu.memory_space<vmem>>, vector<1x8x32xf32>
    %143 = vector.shape_cast %142 : vector<1x8x32xf32> to vector<8x32xf32>
    %144 = vector.shape_cast %140 : vector<8x32xf32> to vector<1x8x32xf32>
    tpu.vector_store %arg11[%141, %c0_43, %c0_44], %144 {strides = array<i32>} : memref<8x8x32xf32, #tpu.memory_space<vmem>>, vector<1x8x32xf32>,
    %c3_i32 = arith.constant 3 : i32
    %cst_45 = arith.constant dense<0.000000e+00> : vector<8x128xf32>
    %145 = tpu.matmul %140, %11, %cst_45 {dimension_numbers = #tpu.dot_dimension_numbers<[1], [0], [0], [1], [0, 0, 1, 1], [], []>} : vector<8x32xf32>, vector<32x128xf32>, vector<8x128xf32> -> vector<8x128xf32>
    %146 = arith.index_cast %c3_i32 : i32 to index
    %c0_46 = arith.constant 0 : index
    %c0_47 = arith.constant 0 : index
    %147 = vector.load %arg10[%146, %c0_46, %c0_47] : memref<8x8x128xf32, #tpu.memory_space<vmem>>, vector<1x8x128xf32>
    %148 = vector.shape_cast %147 : vector<1x8x128xf32> to vector<8x128xf32>
    %cst_48 = arith.constant dense<0.000000e+00> : vector<8x128xf32>
    %149 = tpu.matmul %122, %9, %cst_48 {dimension_numbers = #tpu.dot_dimension_numbers<[1], [0], [0], [1], [0, 0, 1, 1], [], []>} : vector<8x32xf32>, vector<32x128xf32>, vector<8x128xf32> -> vector<8x128xf32>
    %150 = arith.addf %148, %149 : vector<8x128xf32>
    %151 = arith.negf %150 : vector<8x128xf32>
    %152 = math.exp %151 : vector<8x128xf32>
    %cst_49 = arith.constant 1.000000e+00 : f32
    %153 = vector.broadcast %cst_49 : f32 to vector<8x128xf32>
    %154 = arith.addf %153, %152 : vector<8x128xf32>
    %155 = arith.divf %153, %154 : vector<8x128xf32>
    %156 = math.tanh %150 : vector<8x128xf32>
    %157 = vector.extract_strided_slice %155 {offsets = [0, 32], sizes = [8, 32], strides = [1, 1]} : vector<8x128xf32> to vector<8x32xf32>
    %158 = arith.mulf %157, %119 : vector<8x32xf32>
    %159 = vector.extract_strided_slice %155 {offsets = [0, 0], sizes = [8, 32], strides = [1, 1]} : vector<8x128xf32> to vector<8x32xf32>
    %160 = vector.extract_strided_slice %156 {offsets = [0, 64], sizes = [8, 32], strides = [1, 1]} : vector<8x128xf32> to vector<8x32xf32>
    %161 = arith.mulf %159, %160 : vector<8x32xf32>
    %162 = arith.addf %158, %161 : vector<8x32xf32>
    %163 = vector.extract_strided_slice %155 {offsets = [0, 96], sizes = [8, 32], strides = [1, 1]} : vector<8x128xf32> to vector<8x32xf32>
    %164 = math.tanh %162 : vector<8x32xf32>
    %165 = arith.mulf %163, %164 : vector<8x32xf32>
    %cst_50 = arith.constant dense<0.000000e+00> : vector<8x128xf32>
    %166 = tpu.matmul %165, %10, %cst_50 {dimension_numbers = #tpu.dot_dimension_numbers<[1], [0], [0], [1], [0, 0, 1, 1], [], []>} : vector<8x32xf32>, vector<32x128xf32>, vector<8x128xf32> -> vector<8x128xf32>
    %167 = arith.addf %166, %145 : vector<8x128xf32>
    %168 = arith.addf %167, %14 : vector<8x128xf32>
    %169 = arith.negf %168 : vector<8x128xf32>
    %170 = math.exp %169 : vector<8x128xf32>
    %cst_51 = arith.constant 1.000000e+00 : f32
    %171 = vector.broadcast %cst_51 : f32 to vector<8x128xf32>
    %172 = arith.addf %171, %170 : vector<8x128xf32>
    %173 = arith.divf %171, %172 : vector<8x128xf32>
    %174 = math.tanh %168 : vector<8x128xf32>
    %175 = vector.extract_strided_slice %173 {offsets = [0, 32], sizes = [8, 32], strides = [1, 1]} : vector<8x128xf32> to vector<8x32xf32>
    %176 = arith.mulf %175, %137 : vector<8x32xf32>
    %177 = vector.extract_strided_slice %173 {offsets = [0, 0], sizes = [8, 32], strides = [1, 1]} : vector<8x128xf32> to vector<8x32xf32>
    %178 = vector.extract_strided_slice %174 {offsets = [0, 64], sizes = [8, 32], strides = [1, 1]} : vector<8x128xf32> to vector<8x32xf32>
    %179 = arith.mulf %177, %178 : vector<8x32xf32>
    %180 = arith.addf %176, %179 : vector<8x32xf32>
    %181 = vector.extract_strided_slice %173 {offsets = [0, 96], sizes = [8, 32], strides = [1, 1]} : vector<8x128xf32> to vector<8x32xf32>
    %182 = math.tanh %180 : vector<8x32xf32>
    %183 = arith.mulf %181, %182 : vector<8x32xf32>
    %184 = arith.index_cast %c3_i32 : i32 to index
    %c0_52 = arith.constant 0 : index
    %c0_53 = arith.constant 0 : index
    %185 = vector.load %arg11[%184, %c0_52, %c0_53] : memref<8x8x32xf32, #tpu.memory_space<vmem>>, vector<1x8x32xf32>
    %186 = vector.shape_cast %185 : vector<1x8x32xf32> to vector<8x32xf32>
    %187 = vector.shape_cast %183 : vector<8x32xf32> to vector<1x8x32xf32>
    tpu.vector_store %arg11[%184, %c0_52, %c0_53], %187 {strides = array<i32>} : memref<8x8x32xf32, #tpu.memory_space<vmem>>, vector<1x8x32xf32>,
    %c4_i32 = arith.constant 4 : i32
    %cst_54 = arith.constant dense<0.000000e+00> : vector<8x128xf32>
    %188 = tpu.matmul %183, %11, %cst_54 {dimension_numbers = #tpu.dot_dimension_numbers<[1], [0], [0], [1], [0, 0, 1, 1], [], []>} : vector<8x32xf32>, vector<32x128xf32>, vector<8x128xf32> -> vector<8x128xf32>
    %189 = arith.index_cast %c4_i32 : i32 to index
    %c0_55 = arith.constant 0 : index
    %c0_56 = arith.constant 0 : index
    %190 = vector.load %arg10[%189, %c0_55, %c0_56] : memref<8x8x128xf32, #tpu.memory_space<vmem>>, vector<1x8x128xf32>
    %191 = vector.shape_cast %190 : vector<1x8x128xf32> to vector<8x128xf32>
    %cst_57 = arith.constant dense<0.000000e+00> : vector<8x128xf32>
    %192 = tpu.matmul %165, %9, %cst_57 {dimension_numbers = #tpu.dot_dimension_numbers<[1], [0], [0], [1], [0, 0, 1, 1], [], []>} : vector<8x32xf32>, vector<32x128xf32>, vector<8x128xf32> -> vector<8x128xf32>
    %193 = arith.addf %191, %192 : vector<8x128xf32>
    %194 = arith.negf %193 : vector<8x128xf32>
    %195 = math.exp %194 : vector<8x128xf32>
    %cst_58 = arith.constant 1.000000e+00 : f32
    %196 = vector.broadcast %cst_58 : f32 to vector<8x128xf32>
    %197 = arith.addf %196, %195 : vector<8x128xf32>
    %198 = arith.divf %196, %197 : vector<8x128xf32>
    %199 = math.tanh %193 : vector<8x128xf32>
    %200 = vector.extract_strided_slice %198 {offsets = [0, 32], sizes = [8, 32], strides = [1, 1]} : vector<8x128xf32> to vector<8x32xf32>
    %201 = arith.mulf %200, %162 : vector<8x32xf32>
    %202 = vector.extract_strided_slice %198 {offsets = [0, 0], sizes = [8, 32], strides = [1, 1]} : vector<8x128xf32> to vector<8x32xf32>
    %203 = vector.extract_strided_slice %199 {offsets = [0, 64], sizes = [8, 32], strides = [1, 1]} : vector<8x128xf32> to vector<8x32xf32>
    %204 = arith.mulf %202, %203 : vector<8x32xf32>
    %205 = arith.addf %201, %204 : vector<8x32xf32>
    %206 = vector.extract_strided_slice %198 {offsets = [0, 96], sizes = [8, 32], strides = [1, 1]} : vector<8x128xf32> to vector<8x32xf32>
    %207 = math.tanh %205 : vector<8x32xf32>
    %208 = arith.mulf %206, %207 : vector<8x32xf32>
    %cst_59 = arith.constant dense<0.000000e+00> : vector<8x128xf32>
    %209 = tpu.matmul %208, %10, %cst_59 {dimension_numbers = #tpu.dot_dimension_numbers<[1], [0], [0], [1], [0, 0, 1, 1], [], []>} : vector<8x32xf32>, vector<32x128xf32>, vector<8x128xf32> -> vector<8x128xf32>
    %210 = arith.addf %209, %188 : vector<8x128xf32>
    %211 = arith.addf %210, %14 : vector<8x128xf32>
    %212 = arith.negf %211 : vector<8x128xf32>
    %213 = math.exp %212 : vector<8x128xf32>
    %cst_60 = arith.constant 1.000000e+00 : f32
    %214 = vector.broadcast %cst_60 : f32 to vector<8x128xf32>
    %215 = arith.addf %214, %213 : vector<8x128xf32>
    %216 = arith.divf %214, %215 : vector<8x128xf32>
    %217 = math.tanh %211 : vector<8x128xf32>
    %218 = vector.extract_strided_slice %216 {offsets = [0, 32], sizes = [8, 32], strides = [1, 1]} : vector<8x128xf32> to vector<8x32xf32>
    %219 = arith.mulf %218, %180 : vector<8x32xf32>
    %220 = vector.extract_strided_slice %216 {offsets = [0, 0], sizes = [8, 32], strides = [1, 1]} : vector<8x128xf32> to vector<8x32xf32>
    %221 = vector.extract_strided_slice %217 {offsets = [0, 64], sizes = [8, 32], strides = [1, 1]} : vector<8x128xf32> to vector<8x32xf32>
    %222 = arith.mulf %220, %221 : vector<8x32xf32>
    %223 = arith.addf %219, %222 : vector<8x32xf32>
    %224 = vector.extract_strided_slice %216 {offsets = [0, 96], sizes = [8, 32], strides = [1, 1]} : vector<8x128xf32> to vector<8x32xf32>
    %225 = math.tanh %223 : vector<8x32xf32>
    %226 = arith.mulf %224, %225 : vector<8x32xf32>
    %227 = arith.index_cast %c4_i32 : i32 to index
    %c0_61 = arith.constant 0 : index
    %c0_62 = arith.constant 0 : index
    %228 = vector.load %arg11[%227, %c0_61, %c0_62] : memref<8x8x32xf32, #tpu.memory_space<vmem>>, vector<1x8x32xf32>
    %229 = vector.shape_cast %228 : vector<1x8x32xf32> to vector<8x32xf32>
    %230 = vector.shape_cast %226 : vector<8x32xf32> to vector<1x8x32xf32>
    tpu.vector_store %arg11[%227, %c0_61, %c0_62], %230 {strides = array<i32>} : memref<8x8x32xf32, #tpu.memory_space<vmem>>, vector<1x8x32xf32>,
    %c5_i32 = arith.constant 5 : i32
    %cst_63 = arith.constant dense<0.000000e+00> : vector<8x128xf32>
    %231 = tpu.matmul %226, %11, %cst_63 {dimension_numbers = #tpu.dot_dimension_numbers<[1], [0], [0], [1], [0, 0, 1, 1], [], []>} : vector<8x32xf32>, vector<32x128xf32>, vector<8x128xf32> -> vector<8x128xf32>
    %232 = arith.index_cast %c5_i32 : i32 to index
    %c0_64 = arith.constant 0 : index
    %c0_65 = arith.constant 0 : index
    %233 = vector.load %arg10[%232, %c0_64, %c0_65] : memref<8x8x128xf32, #tpu.memory_space<vmem>>, vector<1x8x128xf32>
    %234 = vector.shape_cast %233 : vector<1x8x128xf32> to vector<8x128xf32>
    %cst_66 = arith.constant dense<0.000000e+00> : vector<8x128xf32>
    %235 = tpu.matmul %208, %9, %cst_66 {dimension_numbers = #tpu.dot_dimension_numbers<[1], [0], [0], [1], [0, 0, 1, 1], [], []>} : vector<8x32xf32>, vector<32x128xf32>, vector<8x128xf32> -> vector<8x128xf32>
    %236 = arith.addf %234, %235 : vector<8x128xf32>
    %237 = arith.negf %236 : vector<8x128xf32>
    %238 = math.exp %237 : vector<8x128xf32>
    %cst_67 = arith.constant 1.000000e+00 : f32
    %239 = vector.broadcast %cst_67 : f32 to vector<8x128xf32>
    %240 = arith.addf %239, %238 : vector<8x128xf32>
    %241 = arith.divf %239, %240 : vector<8x128xf32>
    %242 = math.tanh %236 : vector<8x128xf32>
    %243 = vector.extract_strided_slice %241 {offsets = [0, 32], sizes = [8, 32], strides = [1, 1]} : vector<8x128xf32> to vector<8x32xf32>
    %244 = arith.mulf %243, %205 : vector<8x32xf32>
    %245 = vector.extract_strided_slice %241 {offsets = [0, 0], sizes = [8, 32], strides = [1, 1]} : vector<8x128xf32> to vector<8x32xf32>
    %246 = vector.extract_strided_slice %242 {offsets = [0, 64], sizes = [8, 32], strides = [1, 1]} : vector<8x128xf32> to vector<8x32xf32>
    %247 = arith.mulf %245, %246 : vector<8x32xf32>
    %248 = arith.addf %244, %247 : vector<8x32xf32>
    %249 = vector.extract_strided_slice %241 {offsets = [0, 96], sizes = [8, 32], strides = [1, 1]} : vector<8x128xf32> to vector<8x32xf32>
    %250 = math.tanh %248 : vector<8x32xf32>
    %251 = arith.mulf %249, %250 : vector<8x32xf32>
    %cst_68 = arith.constant dense<0.000000e+00> : vector<8x128xf32>
    %252 = tpu.matmul %251, %10, %cst_68 {dimension_numbers = #tpu.dot_dimension_numbers<[1], [0], [0], [1], [0, 0, 1, 1], [], []>} : vector<8x32xf32>, vector<32x128xf32>, vector<8x128xf32> -> vector<8x128xf32>
    %253 = arith.addf %252, %231 : vector<8x128xf32>
    %254 = arith.addf %253, %14 : vector<8x128xf32>
    %255 = arith.negf %254 : vector<8x128xf32>
    %256 = math.exp %255 : vector<8x128xf32>
    %cst_69 = arith.constant 1.000000e+00 : f32
    %257 = vector.broadcast %cst_69 : f32 to vector<8x128xf32>
    %258 = arith.addf %257, %256 : vector<8x128xf32>
    %259 = arith.divf %257, %258 : vector<8x128xf32>
    %260 = math.tanh %254 : vector<8x128xf32>
    %261 = vector.extract_strided_slice %259 {offsets = [0, 32], sizes = [8, 32], strides = [1, 1]} : vector<8x128xf32> to vector<8x32xf32>
    %262 = arith.mulf %261, %223 : vector<8x32xf32>
    %263 = vector.extract_strided_slice %259 {offsets = [0, 0], sizes = [8, 32], strides = [1, 1]} : vector<8x128xf32> to vector<8x32xf32>
    %264 = vector.extract_strided_slice %260 {offsets = [0, 64], sizes = [8, 32], strides = [1, 1]} : vector<8x128xf32> to vector<8x32xf32>
    %265 = arith.mulf %263, %264 : vector<8x32xf32>
    %266 = arith.addf %262, %265 : vector<8x32xf32>
    %267 = vector.extract_strided_slice %259 {offsets = [0, 96], sizes = [8, 32], strides = [1, 1]} : vector<8x128xf32> to vector<8x32xf32>
    %268 = math.tanh %266 : vector<8x32xf32>
    %269 = arith.mulf %267, %268 : vector<8x32xf32>
    %270 = arith.index_cast %c5_i32 : i32 to index
    %c0_70 = arith.constant 0 : index
    %c0_71 = arith.constant 0 : index
    %271 = vector.load %arg11[%270, %c0_70, %c0_71] : memref<8x8x32xf32, #tpu.memory_space<vmem>>, vector<1x8x32xf32>
    %272 = vector.shape_cast %271 : vector<1x8x32xf32> to vector<8x32xf32>
    %273 = vector.shape_cast %269 : vector<8x32xf32> to vector<1x8x32xf32>
    tpu.vector_store %arg11[%270, %c0_70, %c0_71], %273 {strides = array<i32>} : memref<8x8x32xf32, #tpu.memory_space<vmem>>, vector<1x8x32xf32>,
    %c6_i32 = arith.constant 6 : i32
    %cst_72 = arith.constant dense<0.000000e+00> : vector<8x128xf32>
    %274 = tpu.matmul %269, %11, %cst_72 {dimension_numbers = #tpu.dot_dimension_numbers<[1], [0], [0], [1], [0, 0, 1, 1], [], []>} : vector<8x32xf32>, vector<32x128xf32>, vector<8x128xf32> -> vector<8x128xf32>
    %275 = arith.index_cast %c6_i32 : i32 to index
    %c0_73 = arith.constant 0 : index
    %c0_74 = arith.constant 0 : index
    %276 = vector.load %arg10[%275, %c0_73, %c0_74] : memref<8x8x128xf32, #tpu.memory_space<vmem>>, vector<1x8x128xf32>
    %277 = vector.shape_cast %276 : vector<1x8x128xf32> to vector<8x128xf32>
    %cst_75 = arith.constant dense<0.000000e+00> : vector<8x128xf32>
    %278 = tpu.matmul %251, %9, %cst_75 {dimension_numbers = #tpu.dot_dimension_numbers<[1], [0], [0], [1], [0, 0, 1, 1], [], []>} : vector<8x32xf32>, vector<32x128xf32>, vector<8x128xf32> -> vector<8x128xf32>
    %279 = arith.addf %277, %278 : vector<8x128xf32>
    %280 = arith.negf %279 : vector<8x128xf32>
    %281 = math.exp %280 : vector<8x128xf32>
    %cst_76 = arith.constant 1.000000e+00 : f32
    %282 = vector.broadcast %cst_76 : f32 to vector<8x128xf32>
    %283 = arith.addf %282, %281 : vector<8x128xf32>
    %284 = arith.divf %282, %283 : vector<8x128xf32>
    %285 = math.tanh %279 : vector<8x128xf32>
    %286 = vector.extract_strided_slice %284 {offsets = [0, 32], sizes = [8, 32], strides = [1, 1]} : vector<8x128xf32> to vector<8x32xf32>
    %287 = arith.mulf %286, %248 : vector<8x32xf32>
    %288 = vector.extract_strided_slice %284 {offsets = [0, 0], sizes = [8, 32], strides = [1, 1]} : vector<8x128xf32> to vector<8x32xf32>
    %289 = vector.extract_strided_slice %285 {offsets = [0, 64], sizes = [8, 32], strides = [1, 1]} : vector<8x128xf32> to vector<8x32xf32>
    %290 = arith.mulf %288, %289 : vector<8x32xf32>
    %291 = arith.addf %287, %290 : vector<8x32xf32>
    %292 = vector.extract_strided_slice %284 {offsets = [0, 96], sizes = [8, 32], strides = [1, 1]} : vector<8x128xf32> to vector<8x32xf32>
    %293 = math.tanh %291 : vector<8x32xf32>
    %294 = arith.mulf %292, %293 : vector<8x32xf32>
    %cst_77 = arith.constant dense<0.000000e+00> : vector<8x128xf32>
    %295 = tpu.matmul %294, %10, %cst_77 {dimension_numbers = #tpu.dot_dimension_numbers<[1], [0], [0], [1], [0, 0, 1, 1], [], []>} : vector<8x32xf32>, vector<32x128xf32>, vector<8x128xf32> -> vector<8x128xf32>
    %296 = arith.addf %295, %274 : vector<8x128xf32>
    %297 = arith.addf %296, %14 : vector<8x128xf32>
    %298 = arith.negf %297 : vector<8x128xf32>
    %299 = math.exp %298 : vector<8x128xf32>
    %cst_78 = arith.constant 1.000000e+00 : f32
    %300 = vector.broadcast %cst_78 : f32 to vector<8x128xf32>
    %301 = arith.addf %300, %299 : vector<8x128xf32>
    %302 = arith.divf %300, %301 : vector<8x128xf32>
    %303 = math.tanh %297 : vector<8x128xf32>
    %304 = vector.extract_strided_slice %302 {offsets = [0, 32], sizes = [8, 32], strides = [1, 1]} : vector<8x128xf32> to vector<8x32xf32>
    %305 = arith.mulf %304, %266 : vector<8x32xf32>
    %306 = vector.extract_strided_slice %302 {offsets = [0, 0], sizes = [8, 32], strides = [1, 1]} : vector<8x128xf32> to vector<8x32xf32>
    %307 = vector.extract_strided_slice %303 {offsets = [0, 64], sizes = [8, 32], strides = [1, 1]} : vector<8x128xf32> to vector<8x32xf32>
    %308 = arith.mulf %306, %307 : vector<8x32xf32>
    %309 = arith.addf %305, %308 : vector<8x32xf32>
    %310 = vector.extract_strided_slice %302 {offsets = [0, 96], sizes = [8, 32], strides = [1, 1]} : vector<8x128xf32> to vector<8x32xf32>
    %311 = math.tanh %309 : vector<8x32xf32>
    %312 = arith.mulf %310, %311 : vector<8x32xf32>
    %313 = arith.index_cast %c6_i32 : i32 to index
    %c0_79 = arith.constant 0 : index
    %c0_80 = arith.constant 0 : index
    %314 = vector.load %arg11[%313, %c0_79, %c0_80] : memref<8x8x32xf32, #tpu.memory_space<vmem>>, vector<1x8x32xf32>
    %315 = vector.shape_cast %314 : vector<1x8x32xf32> to vector<8x32xf32>
    %316 = vector.shape_cast %312 : vector<8x32xf32> to vector<1x8x32xf32>
    tpu.vector_store %arg11[%313, %c0_79, %c0_80], %316 {strides = array<i32>} : memref<8x8x32xf32, #tpu.memory_space<vmem>>, vector<1x8x32xf32>,
    %c7_i32 = arith.constant 7 : i32
    %cst_81 = arith.constant dense<0.000000e+00> : vector<8x128xf32>
    %317 = tpu.matmul %312, %11, %cst_81 {dimension_numbers = #tpu.dot_dimension_numbers<[1], [0], [0], [1], [0, 0, 1, 1], [], []>} : vector<8x32xf32>, vector<32x128xf32>, vector<8x128xf32> -> vector<8x128xf32>
    %318 = arith.index_cast %c7_i32 : i32 to index
    %c0_82 = arith.constant 0 : index
    %c0_83 = arith.constant 0 : index
    %319 = vector.load %arg10[%318, %c0_82, %c0_83] : memref<8x8x128xf32, #tpu.memory_space<vmem>>, vector<1x8x128xf32>
    %320 = vector.shape_cast %319 : vector<1x8x128xf32> to vector<8x128xf32>
    %cst_84 = arith.constant dense<0.000000e+00> : vector<8x128xf32>
    %321 = tpu.matmul %294, %9, %cst_84 {dimension_numbers = #tpu.dot_dimension_numbers<[1], [0], [0], [1], [0, 0, 1, 1], [], []>} : vector<8x32xf32>, vector<32x128xf32>, vector<8x128xf32> -> vector<8x128xf32>
    %322 = arith.addf %320, %321 : vector<8x128xf32>
    %323 = arith.negf %322 : vector<8x128xf32>
    %324 = math.exp %323 : vector<8x128xf32>
    %cst_85 = arith.constant 1.000000e+00 : f32
    %325 = vector.broadcast %cst_85 : f32 to vector<8x128xf32>
    %326 = arith.addf %325, %324 : vector<8x128xf32>
    %327 = arith.divf %325, %326 : vector<8x128xf32>
    %328 = math.tanh %322 : vector<8x128xf32>
    %329 = vector.extract_strided_slice %327 {offsets = [0, 32], sizes = [8, 32], strides = [1, 1]} : vector<8x128xf32> to vector<8x32xf32>
    %330 = arith.mulf %329, %291 : vector<8x32xf32>
    %331 = vector.extract_strided_slice %327 {offsets = [0, 0], sizes = [8, 32], strides = [1, 1]} : vector<8x128xf32> to vector<8x32xf32>
    %332 = vector.extract_strided_slice %328 {offsets = [0, 64], sizes = [8, 32], strides = [1, 1]} : vector<8x128xf32> to vector<8x32xf32>
    %333 = arith.mulf %331, %332 : vector<8x32xf32>
    %334 = arith.addf %330, %333 : vector<8x32xf32>
    %335 = vector.extract_strided_slice %327 {offsets = [0, 96], sizes = [8, 32], strides = [1, 1]} : vector<8x128xf32> to vector<8x32xf32>
    %336 = math.tanh %334 : vector<8x32xf32>
    %337 = arith.mulf %335, %336 : vector<8x32xf32>
    %cst_86 = arith.constant dense<0.000000e+00> : vector<8x128xf32>
    %338 = tpu.matmul %337, %10, %cst_86 {dimension_numbers = #tpu.dot_dimension_numbers<[1], [0], [0], [1], [0, 0, 1, 1], [], []>} : vector<8x32xf32>, vector<32x128xf32>, vector<8x128xf32> -> vector<8x128xf32>
    %339 = arith.addf %338, %317 : vector<8x128xf32>
    %340 = arith.addf %339, %14 : vector<8x128xf32>
    %341 = arith.negf %340 : vector<8x128xf32>
    %342 = math.exp %341 : vector<8x128xf32>
    %cst_87 = arith.constant 1.000000e+00 : f32
    %343 = vector.broadcast %cst_87 : f32 to vector<8x128xf32>
    %344 = arith.addf %343, %342 : vector<8x128xf32>
    %345 = arith.divf %343, %344 : vector<8x128xf32>
    %346 = math.tanh %340 : vector<8x128xf32>
    %347 = vector.extract_strided_slice %345 {offsets = [0, 32], sizes = [8, 32], strides = [1, 1]} : vector<8x128xf32> to vector<8x32xf32>
    %348 = arith.mulf %347, %309 : vector<8x32xf32>
    %349 = vector.extract_strided_slice %345 {offsets = [0, 0], sizes = [8, 32], strides = [1, 1]} : vector<8x128xf32> to vector<8x32xf32>
    %350 = vector.extract_strided_slice %346 {offsets = [0, 64], sizes = [8, 32], strides = [1, 1]} : vector<8x128xf32> to vector<8x32xf32>
    %351 = arith.mulf %349, %350 : vector<8x32xf32>
    %352 = arith.addf %348, %351 : vector<8x32xf32>
    %353 = vector.extract_strided_slice %345 {offsets = [0, 96], sizes = [8, 32], strides = [1, 1]} : vector<8x128xf32> to vector<8x32xf32>
    %354 = math.tanh %352 : vector<8x32xf32>
    %355 = arith.mulf %353, %354 : vector<8x32xf32>
    %356 = arith.index_cast %c7_i32 : i32 to index
    %c0_88 = arith.constant 0 : index
    %c0_89 = arith.constant 0 : index
    %357 = vector.load %arg11[%356, %c0_88, %c0_89] : memref<8x8x32xf32, #tpu.memory_space<vmem>>, vector<1x8x32xf32>
    %358 = vector.shape_cast %357 : vector<1x8x32xf32> to vector<8x32xf32>
    %359 = vector.shape_cast %355 : vector<8x32xf32> to vector<1x8x32xf32>
    tpu.vector_store %arg11[%356, %c0_88, %c0_89], %359 {strides = array<i32>} : memref<8x8x32xf32, #tpu.memory_space<vmem>>, vector<1x8x32xf32>,
    %c8_i32 = arith.constant 8 : i32
    %c0_90 = arith.constant 0 : index
    %c0_91 = arith.constant 0 : index
    %c0_92 = arith.constant 0 : index
    %360 = vector.load %arg11[%c0_90, %c0_91, %c0_92] : memref<8x8x32xf32, #tpu.memory_space<vmem>>, vector<8x8x32xf32>
    %361 = vector.shape_cast %360 : vector<8x8x32xf32> to vector<64x32xf32>
    %c0_93 = arith.constant 0 : index
    %c0_94 = arith.constant 0 : index
    %362 = vector.load %arg7[%c0_93, %c0_94] : memref<32x1xf32, #tpu.memory_space<vmem>>, vector<32x1xf32>
    %cst_95 = arith.constant dense<0.000000e+00> : vector<64x1xf32>
    %363 = tpu.matmul %361, %362, %cst_95 {dimension_numbers = #tpu.dot_dimension_numbers<[1], [0], [0], [1], [0, 0, 1, 1], [], []>} : vector<64x32xf32>, vector<32x1xf32>, vector<64x1xf32> -> vector<64x1xf32>
    %c0_96 = arith.constant 0 : index
    %c0_97 = arith.constant 0 : index
    %364 = vector.load %arg8[%c0_96, %c0_97] : memref<1x1xf32, #tpu.memory_space<vmem>>, vector<1x1xf32>
    %365 = vector.broadcast %364 : vector<1x1xf32> to vector<64x1xf32>
    %366 = arith.addf %363, %365 : vector<64x1xf32>
    %367 = vector.shape_cast %366 : vector<64x1xf32> to vector<8x8x1xf32>
    %c0_98 = arith.constant 0 : index
    %c0_99 = arith.constant 0 : index
    %c0_100 = arith.constant 0 : index
    %368 = vector.load %arg9[%c0_98, %c0_99, %c0_100] : memref<8x8x1xf32, #tpu.memory_space<vmem>>, vector<8x8x1xf32>
    tpu.vector_store %arg9[%c0_98, %c0_99, %c0_100], %367 {strides = array<i32>} : memref<8x8x1xf32, #tpu.memory_space<vmem>>, vector<8x8x1xf32>,
    return
  }
}

</mosaic_0001>

<llo_original>
// kernel: tpu_custom_call.1
$region0: #{tpu_custom_call.1}
  #allocation0 [shape = 'u32[]', space=smem, size = 0x4, offset = 0x4, fixed_abs, tag = 'smem constant byte address 0x4 - core index']
  #allocation1 [shape = 'u32[72,128]{1,0:T(1,128)}', space=vmem, size = 0x9000, scoped, tag = 'internal scratch']
  #allocation2 [shape = 'f32[8,8,128]{2,1,0:T(8,128)}', space=vmem, size = 0x8000, scoped, tag = 'scratch operand']
  #allocation3 [shape = 'f32[8,8,32]{2,1,0:T(8,128)}', space=vmem, size = 0x8000, scoped, tag = 'scratch operand']
  #allocation4 [shape = 'f32[1,1]{1,0:T(1,128)S(1)}', space=vmem, size = 0x200, scoped, tag = 'scoped memory for tpu_custom_call.1']
  %s0 = inlined_call_operand.vmem [shape: f32[8,8,4], index: 0, kind: input, shape index: {}]
  %s1 = inlined_call_operand.hbm [shape: f32[4,128], index: 1, kind: input, shape index: {}]
  %s2 = inlined_call_operand.vmem [shape: f32[32,128], index: 2, kind: input, shape index: {}]
  %s3 = inlined_call_operand.vmem [shape: f32[1,128], index: 3, kind: input, shape index: {}]
  %s4 = inlined_call_operand.vmem [shape: f32[32,128], index: 4, kind: input, shape index: {}]
  %s5 = inlined_call_operand.vmem [shape: f32[32,128], index: 5, kind: input, shape index: {}]
  %s6 = inlined_call_operand.vmem [shape: f32[1,128], index: 6, kind: input, shape index: {}]
  %s7 = inlined_call_operand.vmem [shape: f32[32,1], index: 7, kind: input, shape index: {}]
  %s8 = inlined_call_operand.<no memory space> [shape: f32[1,1], index: 8, kind: input, shape index: {}]
  %s9 = inlined_call_operand.vmem [shape: f32[8,8,1], index: 9, kind: output, shape index: {}]
  %s10 = sld [smem:[#allocation0]]
  $region50: #{tpu_custom_call.1} parent=0
    _
  %s12 = ssub.s32 1, %s10
  %s13 = scalar_select 0, %s12, %s10
  %v14 = vstv %s8
  %15 = vst [vmem:[#allocation4] sm:$0x1] %v14
  $region1: #{tpu_custom_call.1} parent=0
    #allocation5 [shape = 'u8[2048]{0}', space=vmem, size = 0x800, scoped, tag = 'input window, operand 1, single buffered']
    #allocation6 [shape = 's32[1]{0}', space=sflag, size = 0x4, scoped, tag = 'scoped memory for tpu_custom_call.1']
    %16 = vsyncpa [#allocation6], 0
    // Predicated region
    $region2: #{tpu_custom_call.1} parent=1 // pred_check
      _
    $region3: #{tpu_custom_call.1} parent=1 // pred_check_branch
      %18 = sbr.rel (0) target = $region5
    $region4: #{tpu_custom_call.1} parent=1 // pred_region
      _
    $region5: #{tpu_custom_call.1} parent=1 // pred_fallthru
      _
    // Predicated region
    $region6: #{tpu_custom_call.1} parent=1 // pred_check
      _
    $region7: #{tpu_custom_call.1} parent=1 // pred_check_branch
      %20 = sbr.rel (0) target = $region9
    $region8: #{tpu_custom_call.1} parent=1 // pred_region
      %22 = vsyncadd [#allocation6], 0
      %s24 = sshll.u32 %s1, 4
      %s25 = int_to_ptr.hbm [resolvable:$true] %s24
      %s26 = sshll.u32 [#allocation5], 4
      %s27 = int_to_ptr.vmem [resolvable:$true] %s26
      %29 = dma.hbm_to_vmem [thread:$0]  %s25, 64, %s27, [#allocation6]
    $region9: #{tpu_custom_call.1} parent=1 // pred_fallthru
      _
    // Predicated region
    $region10: #{tpu_custom_call.1} parent=1 // pred_check
      _
    $region11: #{tpu_custom_call.1} parent=1 // pred_check_branch
      %31 = sbr.rel (0) target = $region13
    $region12: #{tpu_custom_call.1} parent=1 // pred_region
      _
    $region13: #{tpu_custom_call.1} parent=1 // pred_fallthru
      _
    // Predicated region
    $region14: #{tpu_custom_call.1} parent=1 // pred_check
      _
    $region15: #{tpu_custom_call.1} parent=1 // pred_check_branch
      %33 = sbr.rel (0) target = $region17
    $region16: #{tpu_custom_call.1} parent=1 // pred_region
      _
    $region17: #{tpu_custom_call.1} parent=1 // pred_fallthru
      _
    // Predicated region
    $region18: #{tpu_custom_call.1} parent=1 // pred_check
      _
    $region19: #{tpu_custom_call.1} parent=1 // pred_check_branch
      %35 = sbr.rel (0) target = $region21
    $region20: #{tpu_custom_call.1} parent=1 // pred_region
      _
    $region21: #{tpu_custom_call.1} parent=1 // pred_fallthru
      _
    // Predicated region
    $region22: #{tpu_custom_call.1} parent=1 // pred_check
      _
    $region23: #{tpu_custom_call.1} parent=1 // pred_check_branch
      %37 = sbr.rel (0) target = $region25
    $region24: #{tpu_custom_call.1} parent=1 // pred_region
      _
    $region25: #{tpu_custom_call.1} parent=1 // pred_fallthru
      _
    // Predicated region
    $region26: #{tpu_custom_call.1} parent=1 // pred_check
      _
    $region27: #{tpu_custom_call.1} parent=1 // pred_check_branch
      %39 = sbr.rel (0) target = $region29
    $region28: #{tpu_custom_call.1} parent=1 // pred_region
      _
    $region29: #{tpu_custom_call.1} parent=1 // pred_fallthru
      _
    // Predicated region
    $region30: #{tpu_custom_call.1} parent=1 // pred_check
      _
    $region31: #{tpu_custom_call.1} parent=1 // pred_check_branch
      %41 = sbr.rel (0) target = $region33
    $region32: #{tpu_custom_call.1} parent=1 // pred_region
      _
    $region33: #{tpu_custom_call.1} parent=1 // pred_fallthru
      _
    // Predicated region
    $region34: #{tpu_custom_call.1} parent=1 // pred_check
      _
    $region35: #{tpu_custom_call.1} parent=1 // pred_check_branch
      %43 = sbr.rel (0) target = $region37
    $region36: #{tpu_custom_call.1} parent=1 // pred_region
      _
    $region37: #{tpu_custom_call.1} parent=1 // pred_fallthru
      _
    // Predicated region
    $region38: #{tpu_custom_call.1} parent=1 // pred_check
      _
    $region39: #{tpu_custom_call.1} parent=1 // pred_check_branch
      %45 = sbr.rel (0) target = $region41
    $region40: #{tpu_custom_call.1} parent=1 // pred_region
      %47 = dma.done [#allocation6], 64
    $region41: #{tpu_custom_call.1} parent=1 // pred_fallthru
      _
    %v48 = vld [vmem:[%s0] sm:$0xff]
    %v49 = vld [vmem:[%s0 + $0x8] sm:$0xff]
    %v50 = vld [vmem:[%s0 + $0x10] sm:$0xff]
    %v51 = vld [vmem:[%s0 + $0x18] sm:$0xff]
    %v52 = vld [vmem:[%s0 + $0x20] sm:$0xff]
    %v53 = vld [vmem:[%s0 + $0x28] sm:$0xff]
    %v54 = vld [vmem:[%s0 + $0x30] sm:$0xff]
    %v55 = vld [vmem:[%s0 + $0x38] sm:$0xff]
    %v56 = vld [vmem:[#allocation5] sm:$0xf]
    %v57 = vld [vmem:[%s3] sm:$0x1]
    %v59 = vperm.slane %v57, 0
    %vm61 = vcmask 31744
    %v63 = vsel %vm61, %v48, 0
    %v66 = vsel %vm61, %v49, 0
    %v69 = vsel %vm61, %v50, 0
    %v72 = vsel %vm61, %v51, 0
    %v75 = vsel %vm61, %v52, 0
    %v78 = vsel %vm61, %v53, 0
    %v81 = vsel %vm61, %v54, 0
    %v84 = vsel %vm61, %v55, 0
    %vm86 = vcmask 1043456
    %v88 = vsel %vm86, %v56, 0
    %90 = vmatpush.msra.mxu0 0.0
    %91 = vmatpush.msra.mxu0 0.0
    %92 = vmatpush.msra.mxu0 0.0
    %93 = vmatpush.msra.mxu0 0.0
    %94 = vmatpush.msra.mxu0 0.0
    %95 = vmatpush.msra.mxu0 0.0
    %96 = vmatpush.msra.mxu0 0.0
    %97 = vmatpush.msra.mxu0 0.0
    %98 = vmatpush.msra.mxu0 0.0
    %99 = vmatpush.msra.mxu0 0.0
    %100 = vmatpush.msra.mxu0 0.0
    %101 = vmatpush.msra.mxu0 0.0
    %102 = vmatpush.msra.mxu0 0.0
    %103 = vmatpush.msra.mxu0 0.0
    %104 = vmatpush.msra.mxu0 0.0
    %105 = vmatpush.msra.mxu0 %v88
    %106 = vmatmul.f32.gmra.mxu0 %v63
    %v107 = vpop.f32.mrf.mxu0
    %v108 = vadd.f32 %v59, %v107
    %109 = vmatmul.f32.gmra.mxu0 %v66
    %v110 = vpop.f32.mrf.mxu0
    %v111 = vadd.f32 %v59, %v110
    %112 = vmatmul.f32.gmra.mxu0 %v69
    %v113 = vpop.f32.mrf.mxu0
    %v114 = vadd.f32 %v59, %v113
    %115 = vmatmul.f32.gmra.mxu0 %v72
    %v116 = vpop.f32.mrf.mxu0
    %v117 = vadd.f32 %v59, %v116
    %118 = vmatmul.f32.gmra.mxu0 %v75
    %v119 = vpop.f32.mrf.mxu0
    %v120 = vadd.f32 %v59, %v119
    %121 = vmatmul.f32.gmra.mxu0 %v78
    %v122 = vpop.f32.mrf.mxu0
    %v123 = vadd.f32 %v59, %v122
    %124 = vmatmul.f32.gmra.mxu0 %v81
    %v125 = vpop.f32.mrf.mxu0
    %v126 = vadd.f32 %v59, %v125
    %127 = vmatmul.f32.gmra.mxu0 %v84
    %v128 = vpop.f32.mrf.mxu0
    %v129 = vadd.f32 %v59, %v128
    %130 = vdwg.mxu0
    %131 = vst [vmem:[#allocation2] sm:$0xff] %v108
    %132 = vst [vmem:[#allocation2 + $0x8] sm:$0xff] %v111
    %133 = vst [vmem:[#allocation2 + $0x10] sm:$0xff] %v114
    %134 = vst [vmem:[#allocation2 + $0x18] sm:$0xff] %v117
    %135 = vst [vmem:[#allocation2 + $0x20] sm:$0xff] %v120
    %136 = vst [vmem:[#allocation2 + $0x28] sm:$0xff] %v123
    %137 = vst [vmem:[#allocation2 + $0x30] sm:$0xff] %v126
    %138 = vst [vmem:[#allocation2 + $0x38] sm:$0xff] %v129
    %v139 = vld [vmem:[%s2] sm:$0xff]
    %v140 = vld [vmem:[%s2 + $0x8] sm:$0xff]
    %v141 = vld [vmem:[%s2 + $0x10] sm:$0xff]
    %v142 = vld [vmem:[%s2 + $0x18] sm:$0xff]
    %v143 = vld [vmem:[%s4] sm:$0xff]
    %v144 = vld [vmem:[%s4 + $0x8] sm:$0xff]
    %v145 = vld [vmem:[%s4 + $0x10] sm:$0xff]
    %v146 = vld [vmem:[%s4 + $0x18] sm:$0xff]
    %v147 = vld [vmem:[%s5] sm:$0xff]
    %v148 = vld [vmem:[%s5 + $0x8] sm:$0xff]
    %v149 = vld [vmem:[%s5 + $0x10] sm:$0xff]
    %v150 = vld [vmem:[%s5 + $0x18] sm:$0xff]
    %v151 = vld [vmem:[%s6] sm:$0x1]
    %v153 = vperm.slane %v151, 0
    %vm155 = vcmask 261120
    %v157 = vsel %vm155, 0.0, 0
    %159 = vmatpush.msra.mxu0 0.0
    %160 = vmatpush.msra.mxu0 0.0
    %161 = vmatpush.msra.mxu0 0.0
    %162 = vmatpush.msra.mxu0 0.0
    %163 = vmatpush.msra.mxu0 0.0
    %164 = vmatpush.msra.mxu0 0.0
    %165 = vmatpush.msra.mxu0 0.0
    %166 = vmatpush.msra.mxu0 0.0
    %167 = vmatpush.msra.mxu0 0.0
    %168 = vmatpush.msra.mxu0 0.0
    %169 = vmatpush.msra.mxu0 0.0
    %170 = vmatpush.msra.mxu0 0.0
    %171 = vmatpush.msra.mxu0 %v150
    %172 = vmatpush.msra.mxu0 %v149
    %173 = vmatpush.msra.mxu0 %v148
    %174 = vmatpush.msra.mxu0 %v147
    %175 = vmatmul.f32.gmra.mxu0 %v157
    %v176 = vpop.f32.mrf.mxu0
    %v177 = vadd.f32 0.0, %v176
    %178 = vdwg.mxu0
    %v179 = vld [vmem:[#allocation2] sm:$0xff]
    %180 = vmatpush.msra.mxu0 0.0
    %181 = vmatpush.msra.mxu0 0.0
    %182 = vmatpush.msra.mxu0 0.0
    %183 = vmatpush.msra.mxu0 0.0
    %184 = vmatpush.msra.mxu0 0.0
    %185 = vmatpush.msra.mxu0 0.0
    %186 = vmatpush.msra.mxu0 0.0
    %187 = vmatpush.msra.mxu0 0.0
    %188 = vmatpush.msra.mxu0 0.0
    %189 = vmatpush.msra.mxu0 0.0
    %190 = vmatpush.msra.mxu0 0.0
    %191 = vmatpush.msra.mxu0 0.0
    %192 = vmatpush.msra.mxu0 %v142
    %193 = vmatpush.msra.mxu0 %v141
    %194 = vmatpush.msra.mxu0 %v140
    %195 = vmatpush.msra.mxu0 %v139
    %196 = vmatmul.f32.gmra.mxu0 %v157
    %v197 = vpop.f32.mrf.mxu0
    %v198 = vadd.f32 0.0, %v197
    %199 = vdwg.mxu0
    %v200 = vadd.f32 %v179, %v198
    %v201 = vxor.u32 %v200, 2147483648
    %v202 = vmul.f32 %v201, 1.442695
    %v203 = vpow.pop %v202
    %v204 = vadd.f32 %v203, 1.0
    %v205 = vrcp.pop %v204
    %v206 = vmul.f32 %v204, %v205
    %v207 = vsub.f32 1.0, %v206
    %v208 = vmul.f32 %v205, %v207
    %v209 = vadd.f32 %v205, %v208
    %vm210 = vweird.f32 %v204
    %vm211 = vweird.f32 %v205
    %vm212 = vmor %vm210, %vm211
    %v213 = vsel %vm212, %v205, %v209
    %v214 = vand.u32 2147483647, %v204
    %vm215 = vcmp.eq.f32.partialorder %v214, 8.507059e+37
    %v216 = vand.u32 %v204, 2147483648
    %v217 = vor.u32 1.1754944e-38, %v216
    %v218 = vsel %vm215, %v217, %v213
    %v219 = vmul.f32 1.0, %v218
    %v220 = vtanh.pop %v200
    %v221 = vmul.f32 %v219, 0.0
    %223 = vrot.lane.b32.xlu0 %v220, 64
    %v224 = vpop.permute.xlu0 %223
    %v226 = vmul.f32 %v219, %v224
    %228 = vrot.lane.b32.xlu0 %v226, 32
    %v229 = vpop.permute.xlu0 %228
    %v231 = vadd.f32 %v221, %v229
    %v232 = vtanh.pop %v231
    %234 = vrot.lane.b32.xlu0 %v232, 64
    %v235 = vpop.permute.xlu0 %234
    %v237 = vmul.f32 %v219, %v235
    %239 = vrot.lane.b32.xlu0 %v237, 32
    %v240 = vpop.permute.xlu0 %239
    %v241 = vsel %vm155, %v240, 0
    %243 = vmatpush.msra.mxu0 0.0
    %244 = vmatpush.msra.mxu0 0.0
    %245 = vmatpush.msra.mxu0 0.0
    %246 = vmatpush.msra.mxu0 0.0
    %247 = vmatpush.msra.mxu0 0.0
    %248 = vmatpush.msra.mxu0 0.0
    %249 = vmatpush.msra.mxu0 0.0
    %250 = vmatpush.msra.mxu0 0.0
    %251 = vmatpush.msra.mxu0 0.0
    %252 = vmatpush.msra.mxu0 0.0
    %253 = vmatpush.msra.mxu0 0.0
    %254 = vmatpush.msra.mxu0 0.0
    %255 = vmatpush.msra.mxu0 %v146
    %256 = vmatpush.msra.mxu0 %v145
    %257 = vmatpush.msra.mxu0 %v144
    %258 = vmatpush.msra.mxu0 %v143
    %259 = vmatmul.f32.gmra.mxu0 %v241
    %v260 = vpop.f32.mrf.mxu0
    %v261 = vadd.f32 %v177, %v260
    %262 = vdwg.mxu0
    %v263 = vadd.f32 %v261, %v153
    %v264 = vxor.u32 %v263, 2147483648
    %v265 = vmul.f32 %v264, 1.442695
    %v266 = vpow.pop %v265
    %v267 = vadd.f32 %v266, 1.0
    %v268 = vrcp.pop %v267
    %v269 = vmul.f32 %v267, %v268
    %v270 = vsub.f32 1.0, %v269
    %v271 = vmul.f32 %v268, %v270
    %v272 = vadd.f32 %v268, %v271
    %vm273 = vweird.f32 %v267
    %vm274 = vweird.f32 %v268
    %vm275 = vmor %vm273, %vm274
    %v276 = vsel %vm275, %v268, %v272
    %v277 = vand.u32 2147483647, %v267
    %vm278 = vcmp.eq.f32.partialorder %v277, 8.507059e+37
    %v279 = vand.u32 %v267, 2147483648
    %v280 = vor.u32 1.1754944e-38, %v279
    %v281 = vsel %vm278, %v280, %v276
    %v282 = vmul.f32 1.0, %v281
    %v283 = vtanh.pop %v263
    %v284 = vmul.f32 %v282, 0.0
    %286 = vrot.lane.b32.xlu0 %v283, 64
    %v287 = vpop.permute.xlu0 %286
    %v289 = vmul.f32 %v282, %v287
    %291 = vrot.lane.b32.xlu0 %v289, 32
    %v292 = vpop.permute.xlu0 %291
    %v294 = vadd.f32 %v284, %v292
    %v295 = vtanh.pop %v294
    %297 = vrot.lane.b32.xlu0 %v295, 64
    %v298 = vpop.permute.xlu0 %297
    %v300 = vmul.f32 %v282, %v298
    %302 = vrot.lane.b32.xlu0 %v300, 32
    %v303 = vpop.permute.xlu0 %302
    %305 = vst.msk [vmem:[#allocation3] sm:$0xff] %vm155, %v303
    %v306 = vsel %vm155, %v303, 0
    %308 = vmatpush.msra.mxu0 0.0
    %309 = vmatpush.msra.mxu0 0.0
    %310 = vmatpush.msra.mxu0 0.0
    %311 = vmatpush.msra.mxu0 0.0
    %312 = vmatpush.msra.mxu0 0.0
    %313 = vmatpush.msra.mxu0 0.0
    %314 = vmatpush.msra.mxu0 0.0
    %315 = vmatpush.msra.mxu0 0.0
    %316 = vmatpush.msra.mxu0 0.0
    %317 = vmatpush.msra.mxu0 0.0
    %318 = vmatpush.msra.mxu0 0.0
    %319 = vmatpush.msra.mxu0 0.0
    %320 = vmatpush.msra.mxu0 %v150
    %321 = vmatpush.msra.mxu0 %v149
    %322 = vmatpush.msra.mxu0 %v148
    %323 = vmatpush.msra.mxu0 %v147
    %324 = vmatmul.f32.gmra.mxu0 %v306
    %v325 = vpop.f32.mrf.mxu0
    %v326 = vadd.f32 0.0, %v325
    %327 = vdwg.mxu0
    %s328 = scalar_lea.vmem [#allocation2], 8
    %v329 = vld [vmem:[%s328] sm:$0xff]
    %330 = vmatpush.msra.mxu0 0.0
    %331 = vmatpush.msra.mxu0 0.0
    %332 = vmatpush.msra.mxu0 0.0
    %333 = vmatpush.msra.mxu0 0.0
    %334 = vmatpush.msra.mxu0 0.0
    %335 = vmatpush.msra.mxu0 0.0
    %336 = vmatpush.msra.mxu0 0.0
    %337 = vmatpush.msra.mxu0 0.0
    %338 = vmatpush.msra.mxu0 0.0
    %339 = vmatpush.msra.mxu0 0.0
    %340 = vmatpush.msra.mxu0 0.0
    %341 = vmatpush.msra.mxu0 0.0
    %342 = vmatpush.msra.mxu0 %v142
    %343 = vmatpush.msra.mxu0 %v141
    %344 = vmatpush.msra.mxu0 %v140
    %345 = vmatpush.msra.mxu0 %v139
    %346 = vmatmul.f32.gmra.mxu0 %v241
    %v347 = vpop.f32.mrf.mxu0
    %v348 = vadd.f32 0.0, %v347
    %349 = vdwg.mxu0
    %v350 = vadd.f32 %v329, %v348
    %v351 = vxor.u32 %v350, 2147483648
    %v352 = vmul.f32 %v351, 1.442695
    %v353 = vpow.pop %v352
    %v354 = vadd.f32 %v353, 1.0
    %v355 = vrcp.pop %v354
    %v356 = vmul.f32 %v354, %v355
    %v357 = vsub.f32 1.0, %v356
    %v358 = vmul.f32 %v355, %v357
    %v359 = vadd.f32 %v355, %v358
    %vm360 = vweird.f32 %v354
    %vm361 = vweird.f32 %v355
    %vm362 = vmor %vm360, %vm361
    %v363 = vsel %vm362, %v355, %v359
    %v364 = vand.u32 2147483647, %v354
    %vm365 = vcmp.eq.f32.partialorder %v364, 8.507059e+37
    %v366 = vand.u32 %v354, 2147483648
    %v367 = vor.u32 1.1754944e-38, %v366
    %v368 = vsel %vm365, %v367, %v363
    %v369 = vmul.f32 1.0, %v368
    %v370 = vtanh.pop %v350
    %v371 = vmul.f32 %v369, %v231
    %373 = vrot.lane.b32.xlu0 %v370, 64
    %v374 = vpop.permute.xlu0 %373
    %v376 = vmul.f32 %v369, %v374
    %378 = vrot.lane.b32.xlu0 %v376, 32
    %v379 = vpop.permute.xlu0 %378
    %v381 = vadd.f32 %v371, %v379
    %v382 = vtanh.pop %v381
    %384 = vrot.lane.b32.xlu0 %v382, 64
    %v385 = vpop.permute.xlu0 %384
    %v387 = vmul.f32 %v369, %v385
    %389 = vrot.lane.b32.xlu0 %v387, 32
    %v390 = vpop.permute.xlu0 %389
    %v391 = vsel %vm155, %v390, 0
    %393 = vmatpush.msra.mxu0 0.0
    %394 = vmatpush.msra.mxu0 0.0
    %395 = vmatpush.msra.mxu0 0.0
    %396 = vmatpush.msra.mxu0 0.0
    %397 = vmatpush.msra.mxu0 0.0
    %398 = vmatpush.msra.mxu0 0.0
    %399 = vmatpush.msra.mxu0 0.0
    %400 = vmatpush.msra.mxu0 0.0
    %401 = vmatpush.msra.mxu0 0.0
    %402 = vmatpush.msra.mxu0 0.0
    %403 = vmatpush.msra.mxu0 0.0
    %404 = vmatpush.msra.mxu0 0.0
    %405 = vmatpush.msra.mxu0 %v146
    %406 = vmatpush.msra.mxu0 %v145
    %407 = vmatpush.msra.mxu0 %v144
    %408 = vmatpush.msra.mxu0 %v143
    %409 = vmatmul.f32.gmra.mxu0 %v391
    %v410 = vpop.f32.mrf.mxu0
    %v411 = vadd.f32 %v326, %v410
    %412 = vdwg.mxu0
    %v413 = vadd.f32 %v411, %v153
    %v414 = vxor.u32 %v413, 2147483648
    %v415 = vmul.f32 %v414, 1.442695
    %v416 = vpow.pop %v415
    %v417 = vadd.f32 %v416, 1.0
    %v418 = vrcp.pop %v417
    %v419 = vmul.f32 %v417, %v418
    %v420 = vsub.f32 1.0, %v419
    %v421 = vmul.f32 %v418, %v420
    %v422 = vadd.f32 %v418, %v421
    %vm423 = vweird.f32 %v417
    %vm424 = vweird.f32 %v418
    %vm425 = vmor %vm423, %vm424
    %v426 = vsel %vm425, %v418, %v422
    %v427 = vand.u32 2147483647, %v417
    %vm428 = vcmp.eq.f32.partialorder %v427, 8.507059e+37
    %v429 = vand.u32 %v417, 2147483648
    %v430 = vor.u32 1.1754944e-38, %v429
    %v431 = vsel %vm428, %v430, %v426
    %v432 = vmul.f32 1.0, %v431
    %v433 = vtanh.pop %v413
    %v434 = vmul.f32 %v432, %v294
    %436 = vrot.lane.b32.xlu0 %v433, 64
    %v437 = vpop.permute.xlu0 %436
    %v439 = vmul.f32 %v432, %v437
    %441 = vrot.lane.b32.xlu0 %v439, 32
    %v442 = vpop.permute.xlu0 %441
    %v444 = vadd.f32 %v434, %v442
    %v445 = vtanh.pop %v444
    %447 = vrot.lane.b32.xlu0 %v445, 64
    %v448 = vpop.permute.xlu0 %447
    %v450 = vmul.f32 %v432, %v448
    %452 = vrot.lane.b32.xlu0 %v450, 32
    %v453 = vpop.permute.xlu0 %452
    %s455 = scalar_lea.vmem [#allocation3], 8
    %456 = vst.msk [vmem:[%s455] sm:$0xff] %vm155, %v453
    %v457 = vsel %vm155, %v453, 0
    %459 = vmatpush.msra.mxu0 0.0
    %460 = vmatpush.msra.mxu0 0.0
    %461 = vmatpush.msra.mxu0 0.0
    %462 = vmatpush.msra.mxu0 0.0
    %463 = vmatpush.msra.mxu0 0.0
    %464 = vmatpush.msra.mxu0 0.0
    %465 = vmatpush.msra.mxu0 0.0
    %466 = vmatpush.msra.mxu0 0.0
    %467 = vmatpush.msra.mxu0 0.0
    %468 = vmatpush.msra.mxu0 0.0
    %469 = vmatpush.msra.mxu0 0.0
    %470 = vmatpush.msra.mxu0 0.0
    %471 = vmatpush.msra.mxu0 %v150
    %472 = vmatpush.msra.mxu0 %v149
    %473 = vmatpush.msra.mxu0 %v148
    %474 = vmatpush.msra.mxu0 %v147
    %475 = vmatmul.f32.gmra.mxu0 %v457
    %v476 = vpop.f32.mrf.mxu0
    %v477 = vadd.f32 0.0, %v476
    %478 = vdwg.mxu0
    %s479 = scalar_lea.vmem [#allocation2], 16
    %v480 = vld [vmem:[%s479] sm:$0xff]
    %481 = vmatpush.msra.mxu0 0.0
    %482 = vmatpush.msra.mxu0 0.0
    %483 = vmatpush.msra.mxu0 0.0
    %484 = vmatpush.msra.mxu0 0.0
    %485 = vmatpush.msra.mxu0 0.0
    %486 = vmatpush.msra.mxu0 0.0
    %487 = vmatpush.msra.mxu0 0.0
    %488 = vmatpush.msra.mxu0 0.0
    %489 = vmatpush.msra.mxu0 0.0
    %490 = vmatpush.msra.mxu0 0.0
    %491 = vmatpush.msra.mxu0 0.0
    %492 = vmatpush.msra.mxu0 0.0
    %493 = vmatpush.msra.mxu0 %v142
    %494 = vmatpush.msra.mxu0 %v141
    %495 = vmatpush.msra.mxu0 %v140
    %496 = vmatpush.msra.mxu0 %v139
    %497 = vmatmul.f32.gmra.mxu0 %v391
    %v498 = vpop.f32.mrf.mxu0
    %v499 = vadd.f32 0.0, %v498
    %500 = vdwg.mxu0
    %v501 = vadd.f32 %v480, %v499
    %v502 = vxor.u32 %v501, 2147483648
    %v503 = vmul.f32 %v502, 1.442695
    %v504 = vpow.pop %v503
    %v505 = vadd.f32 %v504, 1.0
    %v506 = vrcp.pop %v505
    %v507 = vmul.f32 %v505, %v506
    %v508 = vsub.f32 1.0, %v507
    %v509 = vmul.f32 %v506, %v508
    %v510 = vadd.f32 %v506, %v509
    %vm511 = vweird.f32 %v505
    %vm512 = vweird.f32 %v506
    %vm513 = vmor %vm511, %vm512
    %v514 = vsel %vm513, %v506, %v510
    %v515 = vand.u32 2147483647, %v505
    %vm516 = vcmp.eq.f32.partialorder %v515, 8.507059e+37
    %v517 = vand.u32 %v505, 2147483648
    %v518 = vor.u32 1.1754944e-38, %v517
    %v519 = vsel %vm516, %v518, %v514
    %v520 = vmul.f32 1.0, %v519
    %v521 = vtanh.pop %v501
    %v522 = vmul.f32 %v520, %v381
    %524 = vrot.lane.b32.xlu0 %v521, 64
    %v525 = vpop.permute.xlu0 %524
    %v527 = vmul.f32 %v520, %v525
    %529 = vrot.lane.b32.xlu0 %v527, 32
    %v530 = vpop.permute.xlu0 %529
    %v532 = vadd.f32 %v522, %v530
    %v533 = vtanh.pop %v532
    %535 = vrot.lane.b32.xlu0 %v533, 64
    %v536 = vpop.permute.xlu0 %535
    %v538 = vmul.f32 %v520, %v536
    %540 = vrot.lane.b32.xlu0 %v538, 32
    %v541 = vpop.permute.xlu0 %540
    %v542 = vsel %vm155, %v541, 0
    %544 = vmatpush.msra.mxu0 0.0
    %545 = vmatpush.msra.mxu0 0.0
    %546 = vmatpush.msra.mxu0 0.0
    %547 = vmatpush.msra.mxu0 0.0
    %548 = vmatpush.msra.mxu0 0.0
    %549 = vmatpush.msra.mxu0 0.0
    %550 = vmatpush.msra.mxu0 0.0
    %551 = vmatpush.msra.mxu0 0.0
    %552 = vmatpush.msra.mxu0 0.0
    %553 = vmatpush.msra.mxu0 0.0
    %554 = vmatpush.msra.mxu0 0.0
    %555 = vmatpush.msra.mxu0 0.0
    %556 = vmatpush.msra.mxu0 %v146
    %557 = vmatpush.msra.mxu0 %v145
    %558 = vmatpush.msra.mxu0 %v144
    %559 = vmatpush.msra.mxu0 %v143
    %560 = vmatmul.f32.gmra.mxu0 %v542
    %v561 = vpop.f32.mrf.mxu0
    %v562 = vadd.f32 %v477, %v561
    %563 = vdwg.mxu0
    %v564 = vadd.f32 %v562, %v153
    %v565 = vxor.u32 %v564, 2147483648
    %v566 = vmul.f32 %v565, 1.442695
    %v567 = vpow.pop %v566
    %v568 = vadd.f32 %v567, 1.0
    %v569 = vrcp.pop %v568
    %v570 = vmul.f32 %v568, %v569
    %v571 = vsub.f32 1.0, %v570
    %v572 = vmul.f32 %v569, %v571
    %v573 = vadd.f32 %v569, %v572
    %vm574 = vweird.f32 %v568
    %vm575 = vweird.f32 %v569
    %vm576 = vmor %vm574, %vm575
    %v577 = vsel %vm576, %v569, %v573
    %v578 = vand.u32 2147483647, %v568
    %vm579 = vcmp.eq.f32.partialorder %v578, 8.507059e+37
    %v580 = vand.u32 %v568, 2147483648
    %v581 = vor.u32 1.1754944e-38, %v580
    %v582 = vsel %vm579, %v581, %v577
    %v583 = vmul.f32 1.0, %v582
    %v584 = vtanh.pop %v564
    %v585 = vmul.f32 %v583, %v444
    %587 = vrot.lane.b32.xlu0 %v584, 64
    %v588 = vpop.permute.xlu0 %587
    %v590 = vmul.f32 %v583, %v588
    %592 = vrot.lane.b32.xlu0 %v590, 32
    %v593 = vpop.permute.xlu0 %592
    %v595 = vadd.f32 %v585, %v593
    %v596 = vtanh.pop %v595
    %598 = vrot.lane.b32.xlu0 %v596, 64
    %v599 = vpop.permute.xlu0 %598
    %v601 = vmul.f32 %v583, %v599
    %603 = vrot.lane.b32.xlu0 %v601, 32
    %v604 = vpop.permute.xlu0 %603
    %s606 = scalar_lea.vmem [#allocation3], 16
    %607 = vst.msk [vmem:[%s606] sm:$0xff] %vm155, %v604
    %v608 = vsel %vm155, %v604, 0
    %610 = vmatpush.msra.mxu0 0.0
    %611 = vmatpush.msra.mxu0 0.0
    %612 = vmatpush.msra.mxu0 0.0
    %613 = vmatpush.msra.mxu0 0.0
    %614 = vmatpush.msra.mxu0 0.0
    %615 = vmatpush.msra.mxu0 0.0
    %616 = vmatpush.msra.mxu0 0.0
    %617 = vmatpush.msra.mxu0 0.0
    %618 = vmatpush.msra.mxu0 0.0
    %619 = vmatpush.msra.mxu0 0.0
    %620 = vmatpush.msra.mxu0 0.0
    %621 = vmatpush.msra.mxu0 0.0
    %622 = vmatpush.msra.mxu0 %v150
    %623 = vmatpush.msra.mxu0 %v149
    %624 = vmatpush.msra.mxu0 %v148
    %625 = vmatpush.msra.mxu0 %v147
    %626 = vmatmul.f32.gmra.mxu0 %v608
    %v627 = vpop.f32.mrf.mxu0
    %v628 = vadd.f32 0.0, %v627
    %629 = vdwg.mxu0
    %s630 = scalar_lea.vmem [#allocation2], 24
    %v631 = vld [vmem:[%s630] sm:$0xff]
    %632 = vmatpush.msra.mxu0 0.0
    %633 = vmatpush.msra.mxu0 0.0
    %634 = vmatpush.msra.mxu0 0.0
    %635 = vmatpush.msra.mxu0 0.0
    %636 = vmatpush.msra.mxu0 0.0
    %637 = vmatpush.msra.mxu0 0.0
    %638 = vmatpush.msra.mxu0 0.0
    %639 = vmatpush.msra.mxu0 0.0
    %640 = vmatpush.msra.mxu0 0.0
    %641 = vmatpush.msra.mxu0 0.0
    %642 = vmatpush.msra.mxu0 0.0
    %643 = vmatpush.msra.mxu0 0.0
    %644 = vmatpush.msra.mxu0 %v142
    %645 = vmatpush.msra.mxu0 %v141
    %646 = vmatpush.msra.mxu0 %v140
    %647 = vmatpush.msra.mxu0 %v139
    %648 = vmatmul.f32.gmra.mxu0 %v542
    %v649 = vpop.f32.mrf.mxu0
    %v650 = vadd.f32 0.0, %v649
    %651 = vdwg.mxu0
    %v652 = vadd.f32 %v631, %v650
    %v653 = vxor.u32 %v652, 2147483648
    %v654 = vmul.f32 %v653, 1.442695
    %v655 = vpow.pop %v654
    %v656 = vadd.f32 %v655, 1.0
    %v657 = vrcp.pop %v656
    %v658 = vmul.f32 %v656, %v657
    %v659 = vsub.f32 1.0, %v658
    %v660 = vmul.f32 %v657, %v659
    %v661 = vadd.f32 %v657, %v660
    %vm662 = vweird.f32 %v656
    %vm663 = vweird.f32 %v657
    %vm664 = vmor %vm662, %vm663
    %v665 = vsel %vm664, %v657, %v661
    %v666 = vand.u32 2147483647, %v656
    %vm667 = vcmp.eq.f32.partialorder %v666, 8.507059e+37
    %v668 = vand.u32 %v656, 2147483648
    %v669 = vor.u32 1.1754944e-38, %v668
    %v670 = vsel %vm667, %v669, %v665
    %v671 = vmul.f32 1.0, %v670
    %v672 = vtanh.pop %v652
    %v673 = vmul.f32 %v671, %v532
    %675 = vrot.lane.b32.xlu0 %v672, 64
    %v676 = vpop.permute.xlu0 %675
    %v678 = vmul.f32 %v671, %v676
    %680 = vrot.lane.b32.xlu0 %v678, 32
    %v681 = vpop.permute.xlu0 %680
    %v683 = vadd.f32 %v673, %v681
    %v684 = vtanh.pop %v683
    %686 = vrot.lane.b32.xlu0 %v684, 64
    %v687 = vpop.permute.xlu0 %686
    %v689 = vmul.f32 %v671, %v687
    %691 = vrot.lane.b32.xlu0 %v689, 32
    %v692 = vpop.permute.xlu0 %691
    %v693 = vsel %vm155, %v692, 0
    %695 = vmatpush.msra.mxu0 0.0
    %696 = vmatpush.msra.mxu0 0.0
    %697 = vmatpush.msra.mxu0 0.0
    %698 = vmatpush.msra.mxu0 0.0
    %699 = vmatpush.msra.mxu0 0.0
    %700 = vmatpush.msra.mxu0 0.0
    %701 = vmatpush.msra.mxu0 0.0
    %702 = vmatpush.msra.mxu0 0.0
    %703 = vmatpush.msra.mxu0 0.0
    %704 = vmatpush.msra.mxu0 0.0
    %705 = vmatpush.msra.mxu0 0.0
    %706 = vmatpush.msra.mxu0 0.0
    %707 = vmatpush.msra.mxu0 %v146
    %708 = vmatpush.msra.mxu0 %v145
    %709 = vmatpush.msra.mxu0 %v144
    %710 = vmatpush.msra.mxu0 %v143
    %711 = vmatmul.f32.gmra.mxu0 %v693
    %v712 = vpop.f32.mrf.mxu0
    %v713 = vadd.f32 %v628, %v712
    %714 = vdwg.mxu0
    %v715 = vadd.f32 %v713, %v153
    %v716 = vxor.u32 %v715, 2147483648
    %v717 = vmul.f32 %v716, 1.442695
    %v718 = vpow.pop %v717
    %v719 = vadd.f32 %v718, 1.0
    %v720 = vrcp.pop %v719
    %v721 = vmul.f32 %v719, %v720
    %v722 = vsub.f32 1.0, %v721
    %v723 = vmul.f32 %v720, %v722
    %v724 = vadd.f32 %v720, %v723
    %vm725 = vweird.f32 %v719
    %vm726 = vweird.f32 %v720
    %vm727 = vmor %vm725, %vm726
    %v728 = vsel %vm727, %v720, %v724
    %v729 = vand.u32 2147483647, %v719
    %vm730 = vcmp.eq.f32.partialorder %v729, 8.507059e+37
    %v731 = vand.u32 %v719, 2147483648
    %v732 = vor.u32 1.1754944e-38, %v731
    %v733 = vsel %vm730, %v732, %v728
    %v734 = vmul.f32 1.0, %v733
    %v735 = vtanh.pop %v715
    %v736 = vmul.f32 %v734, %v595
    %738 = vrot.lane.b32.xlu0 %v735, 64
    %v739 = vpop.permute.xlu0 %738
    %v741 = vmul.f32 %v734, %v739
    %743 = vrot.lane.b32.xlu0 %v741, 32
    %v744 = vpop.permute.xlu0 %743
    %v746 = vadd.f32 %v736, %v744
    %v747 = vtanh.pop %v746
    %749 = vrot.lane.b32.xlu0 %v747, 64
    %v750 = vpop.permute.xlu0 %749
    %v752 = vmul.f32 %v734, %v750
    %754 = vrot.lane.b32.xlu0 %v752, 32
    %v755 = vpop.permute.xlu0 %754
    %s757 = scalar_lea.vmem [#allocation3], 24
    %758 = vst.msk [vmem:[%s757] sm:$0xff] %vm155, %v755
    %v759 = vsel %vm155, %v755, 0
    %761 = vmatpush.msra.mxu0 0.0
    %762 = vmatpush.msra.mxu0 0.0
    %763 = vmatpush.msra.mxu0 0.0
    %764 = vmatpush.msra.mxu0 0.0
    %765 = vmatpush.msra.mxu0 0.0
    %766 = vmatpush.msra.mxu0 0.0
    %767 = vmatpush.msra.mxu0 0.0
    %768 = vmatpush.msra.mxu0 0.0
    %769 = vmatpush.msra.mxu0 0.0
    %770 = vmatpush.msra.mxu0 0.0
    %771 = vmatpush.msra.mxu0 0.0
    %772 = vmatpush.msra.mxu0 0.0
    %773 = vmatpush.msra.mxu0 %v150
    %774 = vmatpush.msra.mxu0 %v149
    %775 = vmatpush.msra.mxu0 %v148
    %776 = vmatpush.msra.mxu0 %v147
    %777 = vmatmul.f32.gmra.mxu0 %v759
    %v778 = vpop.f32.mrf.mxu0
    %v779 = vadd.f32 0.0, %v778
    %780 = vdwg.mxu0
    %s781 = scalar_lea.vmem [#allocation2], 32
    %v782 = vld [vmem:[%s781] sm:$0xff]
    %783 = vmatpush.msra.mxu0 0.0
    %784 = vmatpush.msra.mxu0 0.0
    %785 = vmatpush.msra.mxu0 0.0
    %786 = vmatpush.msra.mxu0 0.0
    %787 = vmatpush.msra.mxu0 0.0
    %788 = vmatpush.msra.mxu0 0.0
    %789 = vmatpush.msra.mxu0 0.0
    %790 = vmatpush.msra.mxu0 0.0
    %791 = vmatpush.msra.mxu0 0.0
    %792 = vmatpush.msra.mxu0 0.0
    %793 = vmatpush.msra.mxu0 0.0
    %794 = vmatpush.msra.mxu0 0.0
    %795 = vmatpush.msra.mxu0 %v142
    %796 = vmatpush.msra.mxu0 %v141
    %797 = vmatpush.msra.mxu0 %v140
    %798 = vmatpush.msra.mxu0 %v139
    %799 = vmatmul.f32.gmra.mxu0 %v693
    %v800 = vpop.f32.mrf.mxu0
    %v801 = vadd.f32 0.0, %v800
    %802 = vdwg.mxu0
    %v803 = vadd.f32 %v782, %v801
    %v804 = vxor.u32 %v803, 2147483648
    %v805 = vmul.f32 %v804, 1.442695
    %v806 = vpow.pop %v805
    %v807 = vadd.f32 %v806, 1.0
    %v808 = vrcp.pop %v807
    %v809 = vmul.f32 %v807, %v808
    %v810 = vsub.f32 1.0, %v809
    %v811 = vmul.f32 %v808, %v810
    %v812 = vadd.f32 %v808, %v811
    %vm813 = vweird.f32 %v807
    %vm814 = vweird.f32 %v808
    %vm815 = vmor %vm813, %vm814
    %v816 = vsel %vm815, %v808, %v812
    %v817 = vand.u32 2147483647, %v807
    %vm818 = vcmp.eq.f32.partialorder %v817, 8.507059e+37
    %v819 = vand.u32 %v807, 2147483648
    %v820 = vor.u32 1.1754944e-38, %v819
    %v821 = vsel %vm818, %v820, %v816
    %v822 = vmul.f32 1.0, %v821
    %v823 = vtanh.pop %v803
    %v824 = vmul.f32 %v822, %v683
    %826 = vrot.lane.b32.xlu0 %v823, 64
    %v827 = vpop.permute.xlu0 %826
    %v829 = vmul.f32 %v822, %v827
    %831 = vrot.lane.b32.xlu0 %v829, 32
    %v832 = vpop.permute.xlu0 %831
    %v834 = vadd.f32 %v824, %v832
    %v835 = vtanh.pop %v834
    %837 = vrot.lane.b32.xlu0 %v835, 64
    %v838 = vpop.permute.xlu0 %837
    %v840 = vmul.f32 %v822, %v838
    %842 = vrot.lane.b32.xlu0 %v840, 32
    %v843 = vpop.permute.xlu0 %842
    %v844 = vsel %vm155, %v843, 0
    %846 = vmatpush.msra.mxu0 0.0
    %847 = vmatpush.msra.mxu0 0.0
    %848 = vmatpush.msra.mxu0 0.0
    %849 = vmatpush.msra.mxu0 0.0
    %850 = vmatpush.msra.mxu0 0.0
    %851 = vmatpush.msra.mxu0 0.0
    %852 = vmatpush.msra.mxu0 0.0
    %853 = vmatpush.msra.mxu0 0.0
    %854 = vmatpush.msra.mxu0 0.0
    %855 = vmatpush.msra.mxu0 0.0
    %856 = vmatpush.msra.mxu0 0.0
    %857 = vmatpush.msra.mxu0 0.0
    %858 = vmatpush.msra.mxu0 %v146
    %859 = vmatpush.msra.mxu0 %v145
    %860 = vmatpush.msra.mxu0 %v144
    %861 = vmatpush.msra.mxu0 %v143
    %862 = vmatmul.f32.gmra.mxu0 %v844
    %v863 = vpop.f32.mrf.mxu0
    %v864 = vadd.f32 %v779, %v863
    %865 = vdwg.mxu0
    %v866 = vadd.f32 %v864, %v153
    %v867 = vxor.u32 %v866, 2147483648
    %v868 = vmul.f32 %v867, 1.442695
    %v869 = vpow.pop %v868
    %v870 = vadd.f32 %v869, 1.0
    %v871 = vrcp.pop %v870
    %v872 = vmul.f32 %v870, %v871
    %v873 = vsub.f32 1.0, %v872
    %v874 = vmul.f32 %v871, %v873
    %v875 = vadd.f32 %v871, %v874
    %vm876 = vweird.f32 %v870
    %vm877 = vweird.f32 %v871
    %vm878 = vmor %vm876, %vm877
    %v879 = vsel %vm878, %v871, %v875
    %v880 = vand.u32 2147483647, %v870
    %vm881 = vcmp.eq.f32.partialorder %v880, 8.507059e+37
    %v882 = vand.u32 %v870, 2147483648
    %v883 = vor.u32 1.1754944e-38, %v882
    %v884 = vsel %vm881, %v883, %v879
    %v885 = vmul.f32 1.0, %v884
    %v886 = vtanh.pop %v866
    %v887 = vmul.f32 %v885, %v746
    %889 = vrot.lane.b32.xlu0 %v886, 64
    %v890 = vpop.permute.xlu0 %889
    %v892 = vmul.f32 %v885, %v890
    %894 = vrot.lane.b32.xlu0 %v892, 32
    %v895 = vpop.permute.xlu0 %894
    %v897 = vadd.f32 %v887, %v895
    %v898 = vtanh.pop %v897
    %900 = vrot.lane.b32.xlu0 %v898, 64
    %v901 = vpop.permute.xlu0 %900
    %v903 = vmul.f32 %v885, %v901
    %905 = vrot.lane.b32.xlu0 %v903, 32
    %v906 = vpop.permute.xlu0 %905
    %s908 = scalar_lea.vmem [#allocation3], 32
    %909 = vst.msk [vmem:[%s908] sm:$0xff] %vm155, %v906
    %v910 = vsel %vm155, %v906, 0
    %912 = vmatpush.msra.mxu0 0.0
    %913 = vmatpush.msra.mxu0 0.0
    %914 = vmatpush.msra.mxu0 0.0
    %915 = vmatpush.msra.mxu0 0.0
    %916 = vmatpush.msra.mxu0 0.0
    %917 = vmatpush.msra.mxu0 0.0
    %918 = vmatpush.msra.mxu0 0.0
    %919 = vmatpush.msra.mxu0 0.0
    %920 = vmatpush.msra.mxu0 0.0
    %921 = vmatpush.msra.mxu0 0.0
    %922 = vmatpush.msra.mxu0 0.0
    %923 = vmatpush.msra.mxu0 0.0
    %924 = vmatpush.msra.mxu0 %v150
    %925 = vmatpush.msra.mxu0 %v149
    %926 = vmatpush.msra.mxu0 %v148
    %927 = vmatpush.msra.mxu0 %v147
    %928 = vmatmul.f32.gmra.mxu0 %v910
    %v929 = vpop.f32.mrf.mxu0
    %v930 = vadd.f32 0.0, %v929
    %931 = vdwg.mxu0
    %s932 = scalar_lea.vmem [#allocation2], 40
    %v933 = vld [vmem:[%s932] sm:$0xff]
    %934 = vmatpush.msra.mxu0 0.0
    %935 = vmatpush.msra.mxu0 0.0
    %936 = vmatpush.msra.mxu0 0.0
    %937 = vmatpush.msra.mxu0 0.0
    %938 = vmatpush.msra.mxu0 0.0
    %939 = vmatpush.msra.mxu0 0.0
    %940 = vmatpush.msra.mxu0 0.0
    %941 = vmatpush.msra.mxu0 0.0
    %942 = vmatpush.msra.mxu0 0.0
    %943 = vmatpush.msra.mxu0 0.0
    %944 = vmatpush.msra.mxu0 0.0
    %945 = vmatpush.msra.mxu0 0.0
    %946 = vmatpush.msra.mxu0 %v142
    %947 = vmatpush.msra.mxu0 %v141
    %948 = vmatpush.msra.mxu0 %v140
    %949 = vmatpush.msra.mxu0 %v139
    %950 = vmatmul.f32.gmra.mxu0 %v844
    %v951 = vpop.f32.mrf.mxu0
    %v952 = vadd.f32 0.0, %v951
    %953 = vdwg.mxu0
    %v954 = vadd.f32 %v933, %v952
    %v955 = vxor.u32 %v954, 2147483648
    %v956 = vmul.f32 %v955, 1.442695
    %v957 = vpow.pop %v956
    %v958 = vadd.f32 %v957, 1.0
    %v959 = vrcp.pop %v958
    %v960 = vmul.f32 %v958, %v959
    %v961 = vsub.f32 1.0, %v960
    %v962 = vmul.f32 %v959, %v961
    %v963 = vadd.f32 %v959, %v962
    %vm964 = vweird.f32 %v958
    %vm965 = vweird.f32 %v959
    %vm966 = vmor %vm964, %vm965
    %v967 = vsel %vm966, %v959, %v963
    %v968 = vand.u32 2147483647, %v958
    %vm969 = vcmp.eq.f32.partialorder %v968, 8.507059e+37
    %v970 = vand.u32 %v958, 2147483648
    %v971 = vor.u32 1.1754944e-38, %v970
    %v972 = vsel %vm969, %v971, %v967
    %v973 = vmul.f32 1.0, %v972
    %v974 = vtanh.pop %v954
    %v975 = vmul.f32 %v973, %v834
    %977 = vrot.lane.b32.xlu0 %v974, 64
    %v978 = vpop.permute.xlu0 %977
    %v980 = vmul.f32 %v973, %v978
    %982 = vrot.lane.b32.xlu0 %v980, 32
    %v983 = vpop.permute.xlu0 %982
    %v985 = vadd.f32 %v975, %v983
    %v986 = vtanh.pop %v985
    %988 = vrot.lane.b32.xlu0 %v986, 64
    %v989 = vpop.permute.xlu0 %988
    %v991 = vmul.f32 %v973, %v989
    %993 = vrot.lane.b32.xlu0 %v991, 32
    %v994 = vpop.permute.xlu0 %993
    %v995 = vsel %vm155, %v994, 0
    %997 = vmatpush.msra.mxu0 0.0
    %998 = vmatpush.msra.mxu0 0.0
    %999 = vmatpush.msra.mxu0 0.0
    %1000 = vmatpush.msra.mxu0 0.0
    %1001 = vmatpush.msra.mxu0 0.0
    %1002 = vmatpush.msra.mxu0 0.0
    %1003 = vmatpush.msra.mxu0 0.0
    %1004 = vmatpush.msra.mxu0 0.0
    %1005 = vmatpush.msra.mxu0 0.0
    %1006 = vmatpush.msra.mxu0 0.0
    %1007 = vmatpush.msra.mxu0 0.0
    %1008 = vmatpush.msra.mxu0 0.0
    %1009 = vmatpush.msra.mxu0 %v146
    %1010 = vmatpush.msra.mxu0 %v145
    %1011 = vmatpush.msra.mxu0 %v144
    %1012 = vmatpush.msra.mxu0 %v143
    %1013 = vmatmul.f32.gmra.mxu0 %v995
    %v1014 = vpop.f32.mrf.mxu0
    %v1015 = vadd.f32 %v930, %v1014
    %1016 = vdwg.mxu0
    %v1017 = vadd.f32 %v1015, %v153
    %v1018 = vxor.u32 %v1017, 2147483648
    %v1019 = vmul.f32 %v1018, 1.442695
    %v1020 = vpow.pop %v1019
    %v1021 = vadd.f32 %v1020, 1.0
    %v1022 = vrcp.pop %v1021
    %v1023 = vmul.f32 %v1021, %v1022
    %v1024 = vsub.f32 1.0, %v1023
    %v1025 = vmul.f32 %v1022, %v1024
    %v1026 = vadd.f32 %v1022, %v1025
    %vm1027 = vweird.f32 %v1021
    %vm1028 = vweird.f32 %v1022
    %vm1029 = vmor %vm1027, %vm1028
    %v1030 = vsel %vm1029, %v1022, %v1026
    %v1031 = vand.u32 2147483647, %v1021
    %vm1032 = vcmp.eq.f32.partialorder %v1031, 8.507059e+37
    %v1033 = vand.u32 %v1021, 2147483648
    %v1034 = vor.u32 1.1754944e-38, %v1033
    %v1035 = vsel %vm1032, %v1034, %v1030
    %v1036 = vmul.f32 1.0, %v1035
    %v1037 = vtanh.pop %v1017
    %v1038 = vmul.f32 %v1036, %v897
    %1040 = vrot.lane.b32.xlu0 %v1037, 64
    %v1041 = vpop.permute.xlu0 %1040
    %v1043 = vmul.f32 %v1036, %v1041
    %1045 = vrot.lane.b32.xlu0 %v1043, 32
    %v1046 = vpop.permute.xlu0 %1045
    %v1048 = vadd.f32 %v1038, %v1046
    %v1049 = vtanh.pop %v1048
    %1051 = vrot.lane.b32.xlu0 %v1049, 64
    %v1052 = vpop.permute.xlu0 %1051
    %v1054 = vmul.f32 %v1036, %v1052
    %1056 = vrot.lane.b32.xlu0 %v1054, 32
    %v1057 = vpop.permute.xlu0 %1056
    %s1059 = scalar_lea.vmem [#allocation3], 40
    %1060 = vst.msk [vmem:[%s1059] sm:$0xff] %vm155, %v1057
    %v1061 = vsel %vm155, %v1057, 0
    %1063 = vmatpush.msra.mxu0 0.0
    %1064 = vmatpush.msra.mxu0 0.0
    %1065 = vmatpush.msra.mxu0 0.0
    %1066 = vmatpush.msra.mxu0 0.0
    %1067 = vmatpush.msra.mxu0 0.0
    %1068 = vmatpush.msra.mxu0 0.0
    %1069 = vmatpush.msra.mxu0 0.0
    %1070 = vmatpush.msra.mxu0 0.0
    %1071 = vmatpush.msra.mxu0 0.0
    %1072 = vmatpush.msra.mxu0 0.0
    %1073 = vmatpush.msra.mxu0 0.0
    %1074 = vmatpush.msra.mxu0 0.0
    %1075 = vmatpush.msra.mxu0 %v150
    %1076 = vmatpush.msra.mxu0 %v149
    %1077 = vmatpush.msra.mxu0 %v148
    %1078 = vmatpush.msra.mxu0 %v147
    %1079 = vmatmul.f32.gmra.mxu0 %v1061
    %v1080 = vpop.f32.mrf.mxu0
    %v1081 = vadd.f32 0.0, %v1080
    %1082 = vdwg.mxu0
    %s1083 = scalar_lea.vmem [#allocation2], 48
    %v1084 = vld [vmem:[%s1083] sm:$0xff]
    %1085 = vmatpush.msra.mxu0 0.0
    %1086 = vmatpush.msra.mxu0 0.0
    %1087 = vmatpush.msra.mxu0 0.0
    %1088 = vmatpush.msra.mxu0 0.0
    %1089 = vmatpush.msra.mxu0 0.0
    %1090 = vmatpush.msra.mxu0 0.0
    %1091 = vmatpush.msra.mxu0 0.0
    %1092 = vmatpush.msra.mxu0 0.0
    %1093 = vmatpush.msra.mxu0 0.0
    %1094 = vmatpush.msra.mxu0 0.0
    %1095 = vmatpush.msra.mxu0 0.0
    %1096 = vmatpush.msra.mxu0 0.0
    %1097 = vmatpush.msra.mxu0 %v142
    %1098 = vmatpush.msra.mxu0 %v141
    %1099 = vmatpush.msra.mxu0 %v140
    %1100 = vmatpush.msra.mxu0 %v139
    %1101 = vmatmul.f32.gmra.mxu0 %v995
    %v1102 = vpop.f32.mrf.mxu0
    %v1103 = vadd.f32 0.0, %v1102
    %1104 = vdwg.mxu0
    %v1105 = vadd.f32 %v1084, %v1103
    %v1106 = vxor.u32 %v1105, 2147483648
    %v1107 = vmul.f32 %v1106, 1.442695
    %v1108 = vpow.pop %v1107
    %v1109 = vadd.f32 %v1108, 1.0
    %v1110 = vrcp.pop %v1109
    %v1111 = vmul.f32 %v1109, %v1110
    %v1112 = vsub.f32 1.0, %v1111
    %v1113 = vmul.f32 %v1110, %v1112
    %v1114 = vadd.f32 %v1110, %v1113
    %vm1115 = vweird.f32 %v1109
    %vm1116 = vweird.f32 %v1110
    %vm1117 = vmor %vm1115, %vm1116
    %v1118 = vsel %vm1117, %v1110, %v1114
    %v1119 = vand.u32 2147483647, %v1109
    %vm1120 = vcmp.eq.f32.partialorder %v1119, 8.507059e+37
    %v1121 = vand.u32 %v1109, 2147483648
    %v1122 = vor.u32 1.1754944e-38, %v1121
    %v1123 = vsel %vm1120, %v1122, %v1118
    %v1124 = vmul.f32 1.0, %v1123
    %v1125 = vtanh.pop %v1105
    %v1126 = vmul.f32 %v1124, %v985
    %1128 = vrot.lane.b32.xlu0 %v1125, 64
    %v1129 = vpop.permute.xlu0 %1128
    %v1131 = vmul.f32 %v1124, %v1129
    %1133 = vrot.lane.b32.xlu0 %v1131, 32
    %v1134 = vpop.permute.xlu0 %1133
    %v1136 = vadd.f32 %v1126, %v1134
    %v1137 = vtanh.pop %v1136
    %1139 = vrot.lane.b32.xlu0 %v1137, 64
    %v1140 = vpop.permute.xlu0 %1139
    %v1142 = vmul.f32 %v1124, %v1140
    %1144 = vrot.lane.b32.xlu0 %v1142, 32
    %v1145 = vpop.permute.xlu0 %1144
    %v1146 = vsel %vm155, %v1145, 0
    %1148 = vmatpush.msra.mxu0 0.0
    %1149 = vmatpush.msra.mxu0 0.0
    %1150 = vmatpush.msra.mxu0 0.0
    %1151 = vmatpush.msra.mxu0 0.0
    %1152 = vmatpush.msra.mxu0 0.0
    %1153 = vmatpush.msra.mxu0 0.0
    %1154 = vmatpush.msra.mxu0 0.0
    %1155 = vmatpush.msra.mxu0 0.0
    %1156 = vmatpush.msra.mxu0 0.0
    %1157 = vmatpush.msra.mxu0 0.0
    %1158 = vmatpush.msra.mxu0 0.0
    %1159 = vmatpush.msra.mxu0 0.0
    %1160 = vmatpush.msra.mxu0 %v146
    %1161 = vmatpush.msra.mxu0 %v145
    %1162 = vmatpush.msra.mxu0 %v144
    %1163 = vmatpush.msra.mxu0 %v143
    %1164 = vmatmul.f32.gmra.mxu0 %v1146
    %v1165 = vpop.f32.mrf.mxu0
    %v1166 = vadd.f32 %v1081, %v1165
    %1167 = vdwg.mxu0
    %v1168 = vadd.f32 %v1166, %v153
    %v1169 = vxor.u32 %v1168, 2147483648
    %v1170 = vmul.f32 %v1169, 1.442695
    %v1171 = vpow.pop %v1170
    %v1172 = vadd.f32 %v1171, 1.0
    %v1173 = vrcp.pop %v1172
    %v1174 = vmul.f32 %v1172, %v1173
    %v1175 = vsub.f32 1.0, %v1174
    %v1176 = vmul.f32 %v1173, %v1175
    %v1177 = vadd.f32 %v1173, %v1176
    %vm1178 = vweird.f32 %v1172
    %vm1179 = vweird.f32 %v1173
    %vm1180 = vmor %vm1178, %vm1179
    %v1181 = vsel %vm1180, %v1173, %v1177
    %v1182 = vand.u32 2147483647, %v1172
    %vm1183 = vcmp.eq.f32.partialorder %v1182, 8.507059e+37
    %v1184 = vand.u32 %v1172, 2147483648
    %v1185 = vor.u32 1.1754944e-38, %v1184
    %v1186 = vsel %vm1183, %v1185, %v1181
    %v1187 = vmul.f32 1.0, %v1186
    %v1188 = vtanh.pop %v1168
    %v1189 = vmul.f32 %v1187, %v1048
    %1191 = vrot.lane.b32.xlu0 %v1188, 64
    %v1192 = vpop.permute.xlu0 %1191
    %v1194 = vmul.f32 %v1187, %v1192
    %1196 = vrot.lane.b32.xlu0 %v1194, 32
    %v1197 = vpop.permute.xlu0 %1196
    %v1199 = vadd.f32 %v1189, %v1197
    %v1200 = vtanh.pop %v1199
    %1202 = vrot.lane.b32.xlu0 %v1200, 64
    %v1203 = vpop.permute.xlu0 %1202
    %v1205 = vmul.f32 %v1187, %v1203
    %1207 = vrot.lane.b32.xlu0 %v1205, 32
    %v1208 = vpop.permute.xlu0 %1207
    %s1210 = scalar_lea.vmem [#allocation3], 48
    %1211 = vst.msk [vmem:[%s1210] sm:$0xff] %vm155, %v1208
    %v1212 = vsel %vm155, %v1208, 0
    %1214 = vmatpush.msra.mxu0 0.0
    %1215 = vmatpush.msra.mxu0 0.0
    %1216 = vmatpush.msra.mxu0 0.0
    %1217 = vmatpush.msra.mxu0 0.0
    %1218 = vmatpush.msra.mxu0 0.0
    %1219 = vmatpush.msra.mxu0 0.0
    %1220 = vmatpush.msra.mxu0 0.0
    %1221 = vmatpush.msra.mxu0 0.0
    %1222 = vmatpush.msra.mxu0 0.0
    %1223 = vmatpush.msra.mxu0 0.0
    %1224 = vmatpush.msra.mxu0 0.0
    %1225 = vmatpush.msra.mxu0 0.0
    %1226 = vmatpush.msra.mxu0 %v150
    %1227 = vmatpush.msra.mxu0 %v149
    %1228 = vmatpush.msra.mxu0 %v148
    %1229 = vmatpush.msra.mxu0 %v147
    %1230 = vmatmul.f32.gmra.mxu0 %v1212
    %v1231 = vpop.f32.mrf.mxu0
    %v1232 = vadd.f32 0.0, %v1231
    %1233 = vdwg.mxu0
    %s1234 = scalar_lea.vmem [#allocation2], 56
    %v1235 = vld [vmem:[%s1234] sm:$0xff]
    %1236 = vmatpush.msra.mxu0 0.0
    %1237 = vmatpush.msra.mxu0 0.0
    %1238 = vmatpush.msra.mxu0 0.0
    %1239 = vmatpush.msra.mxu0 0.0
    %1240 = vmatpush.msra.mxu0 0.0
    %1241 = vmatpush.msra.mxu0 0.0
    %1242 = vmatpush.msra.mxu0 0.0
    %1243 = vmatpush.msra.mxu0 0.0
    %1244 = vmatpush.msra.mxu0 0.0
    %1245 = vmatpush.msra.mxu0 0.0
    %1246 = vmatpush.msra.mxu0 0.0
    %1247 = vmatpush.msra.mxu0 0.0
    %1248 = vmatpush.msra.mxu0 %v142
    %1249 = vmatpush.msra.mxu0 %v141
    %1250 = vmatpush.msra.mxu0 %v140
    %1251 = vmatpush.msra.mxu0 %v139
    %1252 = vmatmul.f32.gmra.mxu0 %v1146
    %v1253 = vpop.f32.mrf.mxu0
    %v1254 = vadd.f32 0.0, %v1253
    %1255 = vdwg.mxu0
    %v1256 = vadd.f32 %v1235, %v1254
    %v1257 = vxor.u32 %v1256, 2147483648
    %v1258 = vmul.f32 %v1257, 1.442695
    %v1259 = vpow.pop %v1258
    %v1260 = vadd.f32 %v1259, 1.0
    %v1261 = vrcp.pop %v1260
    %v1262 = vmul.f32 %v1260, %v1261
    %v1263 = vsub.f32 1.0, %v1262
    %v1264 = vmul.f32 %v1261, %v1263
    %v1265 = vadd.f32 %v1261, %v1264
    %vm1266 = vweird.f32 %v1260
    %vm1267 = vweird.f32 %v1261
    %vm1268 = vmor %vm1266, %vm1267
    %v1269 = vsel %vm1268, %v1261, %v1265
    %v1270 = vand.u32 2147483647, %v1260
    %vm1271 = vcmp.eq.f32.partialorder %v1270, 8.507059e+37
    %v1272 = vand.u32 %v1260, 2147483648
    %v1273 = vor.u32 1.1754944e-38, %v1272
    %v1274 = vsel %vm1271, %v1273, %v1269
    %v1275 = vmul.f32 1.0, %v1274
    %v1276 = vtanh.pop %v1256
    %v1277 = vmul.f32 %v1275, %v1136
    %1279 = vrot.lane.b32.xlu0 %v1276, 64
    %v1280 = vpop.permute.xlu0 %1279
    %v1282 = vmul.f32 %v1275, %v1280
    %1284 = vrot.lane.b32.xlu0 %v1282, 32
    %v1285 = vpop.permute.xlu0 %1284
    %v1287 = vadd.f32 %v1277, %v1285
    %v1288 = vtanh.pop %v1287
    %1290 = vrot.lane.b32.xlu0 %v1288, 64
    %v1291 = vpop.permute.xlu0 %1290
    %v1293 = vmul.f32 %v1275, %v1291
    %1295 = vrot.lane.b32.xlu0 %v1293, 32
    %v1296 = vpop.permute.xlu0 %1295
    %v1297 = vsel %vm155, %v1296, 0
    %1299 = vmatpush.msra.mxu0 0.0
    %1300 = vmatpush.msra.mxu0 0.0
    %1301 = vmatpush.msra.mxu0 0.0
    %1302 = vmatpush.msra.mxu0 0.0
    %1303 = vmatpush.msra.mxu0 0.0
    %1304 = vmatpush.msra.mxu0 0.0
    %1305 = vmatpush.msra.mxu0 0.0
    %1306 = vmatpush.msra.mxu0 0.0
    %1307 = vmatpush.msra.mxu0 0.0
    %1308 = vmatpush.msra.mxu0 0.0
    %1309 = vmatpush.msra.mxu0 0.0
    %1310 = vmatpush.msra.mxu0 0.0
    %1311 = vmatpush.msra.mxu0 %v146
    %1312 = vmatpush.msra.mxu0 %v145
    %1313 = vmatpush.msra.mxu0 %v144
    %1314 = vmatpush.msra.mxu0 %v143
    %1315 = vmatmul.f32.gmra.mxu0 %v1297
    %v1316 = vpop.f32.mrf.mxu0
    %v1317 = vadd.f32 %v1232, %v1316
    %1318 = vdwg.mxu0
    %v1319 = vadd.f32 %v1317, %v153
    %v1320 = vxor.u32 %v1319, 2147483648
    %v1321 = vmul.f32 %v1320, 1.442695
    %v1322 = vpow.pop %v1321
    %v1323 = vadd.f32 %v1322, 1.0
    %v1324 = vrcp.pop %v1323
    %v1325 = vmul.f32 %v1323, %v1324
    %v1326 = vsub.f32 1.0, %v1325
    %v1327 = vmul.f32 %v1324, %v1326
    %v1328 = vadd.f32 %v1324, %v1327
    %vm1329 = vweird.f32 %v1323
    %vm1330 = vweird.f32 %v1324
    %vm1331 = vmor %vm1329, %vm1330
    %v1332 = vsel %vm1331, %v1324, %v1328
    %v1333 = vand.u32 2147483647, %v1323
    %vm1334 = vcmp.eq.f32.partialorder %v1333, 8.507059e+37
    %v1335 = vand.u32 %v1323, 2147483648
    %v1336 = vor.u32 1.1754944e-38, %v1335
    %v1337 = vsel %vm1334, %v1336, %v1332
    %v1338 = vmul.f32 1.0, %v1337
    %v1339 = vtanh.pop %v1319
    %v1340 = vmul.f32 %v1338, %v1199
    %1342 = vrot.lane.b32.xlu0 %v1339, 64
    %v1343 = vpop.permute.xlu0 %1342
    %v1345 = vmul.f32 %v1338, %v1343
    %1347 = vrot.lane.b32.xlu0 %v1345, 32
    %v1348 = vpop.permute.xlu0 %1347
    %v1350 = vadd.f32 %v1340, %v1348
    %v1351 = vtanh.pop %v1350
    %1353 = vrot.lane.b32.xlu0 %v1351, 64
    %v1354 = vpop.permute.xlu0 %1353
    %v1356 = vmul.f32 %v1338, %v1354
    %1358 = vrot.lane.b32.xlu0 %v1356, 32
    %v1359 = vpop.permute.xlu0 %1358
    %s1361 = scalar_lea.vmem [#allocation3], 56
    %1362 = vst.msk [vmem:[%s1361] sm:$0xff] %vm155, %v1359
    %v1363 = vld [vmem:[#allocation3] sm:$0xff]
    %v1364 = vld [vmem:[#allocation3 + $0x8] sm:$0xff]
    %v1365 = vld [vmem:[#allocation3 + $0x10] sm:$0xff]
    %v1366 = vld [vmem:[#allocation3 + $0x18] sm:$0xff]
    %v1367 = vld [vmem:[#allocation3 + $0x20] sm:$0xff]
    %v1368 = vld [vmem:[#allocation3 + $0x28] sm:$0xff]
    %v1369 = vld [vmem:[#allocation3 + $0x30] sm:$0xff]
    %v1370 = vld [vmem:[#allocation3 + $0x38] sm:$0xff]
    %v1371 = vld [vmem:[%s7] sm:$0xff]
    %v1372 = vld [vmem:[%s7 + $0x8] sm:$0xff]
    %v1373 = vld [vmem:[%s7 + $0x10] sm:$0xff]
    %v1374 = vld [vmem:[%s7 + $0x18] sm:$0xff]
    %v1375 = vld [vmem:[#allocation4] sm:$0x1]
    %v1377 = vperm.slane %v1375, 0
    %v1380 = vsel %vm155, %v1363, 0
    %v1383 = vsel %vm155, %v1364, 0
    %v1386 = vsel %vm155, %v1365, 0
    %v1389 = vsel %vm155, %v1366, 0
    %v1392 = vsel %vm155, %v1367, 0
    %v1395 = vsel %vm155, %v1368, 0
    %v1398 = vsel %vm155, %v1369, 0
    %v1401 = vsel %vm155, %v1370, 0
    %1403 = vmatpush.msra.mxu0 0.0
    %1404 = vmatpush.msra.mxu0 0.0
    %1405 = vmatpush.msra.mxu0 0.0
    %1406 = vmatpush.msra.mxu0 0.0
    %1407 = vmatpush.msra.mxu0 0.0
    %1408 = vmatpush.msra.mxu0 0.0
    %1409 = vmatpush.msra.mxu0 0.0
    %1410 = vmatpush.msra.mxu0 0.0
    %1411 = vmatpush.msra.mxu0 0.0
    %1412 = vmatpush.msra.mxu0 0.0
    %1413 = vmatpush.msra.mxu0 0.0
    %1414 = vmatpush.msra.mxu0 0.0
    %1415 = vmatpush.msra.mxu0 %v1374
    %1416 = vmatpush.msra.mxu0 %v1373
    %1417 = vmatpush.msra.mxu0 %v1372
    %1418 = vmatpush.msra.mxu0 %v1371
    %1419 = vmatmul.f32.gmra.mxu0 %v1380
    %v1420 = vpop.f32.mrf.mxu0
    %v1421 = vadd.f32 %v1377, %v1420
    %1422 = vmatmul.f32.gmra.mxu0 %v1383
    %v1423 = vpop.f32.mrf.mxu0
    %v1424 = vadd.f32 %v1377, %v1423
    %1425 = vmatmul.f32.gmra.mxu0 %v1386
    %v1426 = vpop.f32.mrf.mxu0
    %v1427 = vadd.f32 %v1377, %v1426
    %1428 = vmatmul.f32.gmra.mxu0 %v1389
    %v1429 = vpop.f32.mrf.mxu0
    %v1430 = vadd.f32 %v1377, %v1429
    %1431 = vmatmul.f32.gmra.mxu0 %v1392
    %v1432 = vpop.f32.mrf.mxu0
    %v1433 = vadd.f32 %v1377, %v1432
    %1434 = vmatmul.f32.gmra.mxu0 %v1395
    %v1435 = vpop.f32.mrf.mxu0
    %v1436 = vadd.f32 %v1377, %v1435
    %1437 = vmatmul.f32.gmra.mxu0 %v1398
    %v1438 = vpop.f32.mrf.mxu0
    %v1439 = vadd.f32 %v1377, %v1438
    %1440 = vmatmul.f32.gmra.mxu0 %v1401
    %v1441 = vpop.f32.mrf.mxu0
    %v1442 = vadd.f32 %v1377, %v1441
    %1443 = vdwg.mxu0
    %vm1444 = vcmask 7168
    %1445 = vst.msk [vmem:[%s9] sm:$0xff] %vm1444, %v1421
    %1446 = vst.msk [vmem:[%s9 + $0x8] sm:$0xff] %vm1444, %v1424
    %1447 = vst.msk [vmem:[%s9 + $0x10] sm:$0xff] %vm1444, %v1427
    %1448 = vst.msk [vmem:[%s9 + $0x18] sm:$0xff] %vm1444, %v1430
    %1449 = vst.msk [vmem:[%s9 + $0x20] sm:$0xff] %vm1444, %v1433
    %1450 = vst.msk [vmem:[%s9 + $0x28] sm:$0xff] %vm1444, %v1436
    %1451 = vst.msk [vmem:[%s9 + $0x30] sm:$0xff] %vm1444, %v1439
    %1452 = vst.msk [vmem:[%s9 + $0x38] sm:$0xff] %vm1444, %v1442
    // Predicated region
    $region42: #{tpu_custom_call.1} parent=1 // pred_check
      _
    $region43: #{tpu_custom_call.1} parent=1 // pred_check_branch
      %1454 = sbr.rel (0) target = $region45
    $region44: #{tpu_custom_call.1} parent=1 // pred_region
      _
    $region45: #{tpu_custom_call.1} parent=1 // pred_fallthru
      _
    // Predicated region
    $region46: #{tpu_custom_call.1} parent=1 // pred_check
      _
    $region47: #{tpu_custom_call.1} parent=1 // pred_check_branch
      %1456 = sbr.rel (0) target = $region49
    $region48: #{tpu_custom_call.1} parent=1 // pred_region
      _
    $region49: #{tpu_custom_call.1} parent=1 // pred_fallthru
      _
    %1457 = vsyncpa [#allocation6], 1

</llo_original>
